<compile_context>
chip_gen: v7x
topology: tpu7x:2x2x1
jax: 0.10.0
libtpu: 0.0.40
codegen_flags: <defaults>
</compile_context>

<pallas_src>
import math

import jax
import jax.numpy as jnp
from jax import lax
from jax.experimental import pallas as pl
from jax.experimental.pallas import tpu as pltpu


# -----------------------------------------------------------------------------
# Fused kernel: (pre-gathered embeddings) -> n_layers LSTM over T steps -> FC.
# Gate column order inside the weights is [i, f, o, g] (reordered in init).
# -----------------------------------------------------------------------------
def make_rnn_kernel(n_layers, T, H, B_blk):
    def kernel(*refs):
        x_ref, h0_ref, c0_ref = refs[0:3]                      # x: (T,B,E) bf16
        wih_refs = refs[3:3 + n_layers]                        # (in_dim,4H) bf16
        whh_refs = refs[3 + n_layers:3 + 2 * n_layers]         # (H,4H)      bf16
        b_refs = refs[3 + 2 * n_layers:3 + 3 * n_layers]       # (1,4H)      f32
        wfc_ref = refs[3 + 3 * n_layers]                       # (H,O_pad)   bf16
        bfc_ref = refs[4 + 3 * n_layers]                       # (1,O_pad)   f32
        out_ref = refs[5 + 3 * n_layers]                       # (B,O_pad)   f32
        hN_ref = refs[6 + 3 * n_layers]                        # (L,B,H)     f32
        cN_ref = refs[7 + 3 * n_layers]                        # (L,B,H)     f32
        pre_ref = refs[8 + 3 * n_layers]                       # (T,B,4H) f32 scratch
        seq_ref = refs[9 + 3 * n_layers]                       # (T,B,H) bf16 scratch

        unroll = min(T, 8)
        h_finals = []
        c_finals = []

        for l in range(n_layers):
            # ---- Input projection for ALL time steps: one GEMM per layer ----
            if l == 0:
                xin = x_ref[...]                               # (T, B, E) bf16
            else:
                xin = seq_ref[...]                             # (T, B, H) bf16
            in_dim = xin.shape[-1]
            pre2d = jnp.dot(xin.reshape(T * B_blk, in_dim), wih_refs[l][...],
                            preferred_element_type=jnp.float32)
            # Bias folded in once per layer (not per step).
            pre_ref[...] = (pre2d + b_refs[l][...]).reshape(T, B_blk, 4 * H)

            w_hh = whh_refs[l][...]                            # (H, 4H) bf16
            last_layer = (l == n_layers - 1)

            # ---- Tiny serial recurrence: gates = pre[t] + h @ W_hh ----
            def step(t, carry, _w_hh=w_hh, _last=last_layer):
                h, c = carry                                   # (B, H) f32
                gates = pre_ref[t] + jnp.dot(
                    h.astype(jnp.bfloat16), _w_hh,
                    preferred_element_type=jnp.float32)        # (B, 4H) f32
                sig = jax.nn.sigmoid(gates[:, :3 * H])         # i | f | o
                g = jnp.tanh(gates[:, 3 * H:])
                i = sig[:, :H]
                f = sig[:, H:2 * H]
                o = sig[:, 2 * H:3 * H]
                c_new = f * c + i * g
                h_new = o * jnp.tanh(c_new)
                if not _last:
                    # Next layer's MXU LHS; bf16 halves the scratch traffic.
                    seq_ref[t] = h_new.astype(jnp.bfloat16)
                return h_new, c_new

            h_fin, c_fin = lax.fori_loop(0, T, step, (h0_ref[l], c0_ref[l]),
                                         unroll=unroll)
            h_finals.append(h_fin)
            c_finals.append(c_fin)

        # FC head on the last layer's final hidden state (lane-dense O_pad).
        out_ref[...] = (jnp.dot(h_finals[-1].astype(jnp.bfloat16), wfc_ref[...],
                                preferred_element_type=jnp.float32)
                        + bfc_ref[...]).astype(out_ref.dtype)

        # Final (h, c): one stacked store each instead of L slice writes.
        hN_ref[...] = jnp.stack(h_finals, axis=0).astype(hN_ref.dtype)
        cN_ref[...] = jnp.stack(c_finals, axis=0).astype(cN_ref.dtype)

    return kernel


def fused_lstm_fc(x_tbe, h0, c0, w_ih, w_hh, bias, w_fc_pad, b_fc_pad):
    """x_tbe: (T, B_pad, E) bf16 time-major embeddings; h0, c0: (L, B_pad, H) f32;
    w_ih[l]: (in_dim, 4H) bf16; w_hh[l]: (H, 4H) bf16; bias[l]: (1, 4H) f32;
    w_fc_pad: (H, O_pad) bf16; b_fc_pad: (1, O_pad) f32.
    Returns (out_pad: (B_pad, O_pad), hN: (L, B_pad, H), cN: (L, B_pad, H))."""
    T, B_pad, E = x_tbe.shape
    L, _, H = h0.shape
    O_pad = w_fc_pad.shape[-1]

    # Megacore: split the (padded) batch over a parallel grid axis when it is
    # large enough (2 TensorCores on v7x); degenerates to grid=(1,) otherwise.
    n_blk = 2 if (B_pad >= 16 and B_pad % 16 == 0) else 1
    B_blk = B_pad // n_blk

    kernel = make_rnn_kernel(L, T, H, B_blk)

    def full(a):
        return pl.BlockSpec(tuple(a.shape), lambda b, _nd=a.ndim: (0,) * _nd)

    in_specs = ([pl.BlockSpec((T, B_blk, E), lambda b: (0, b, 0)),
                 pl.BlockSpec((L, B_blk, H), lambda b: (0, b, 0)),
                 pl.BlockSpec((L, B_blk, H), lambda b: (0, b, 0))]
                + [full(w) for w in w_ih]
                + [full(w) for w in w_hh]
                + [full(bb) for bb in bias]
                + [full(w_fc_pad), full(b_fc_pad)])
    out_specs = (pl.BlockSpec((B_blk, O_pad), lambda b: (b, 0)),
                 pl.BlockSpec((L, B_blk, H), lambda b: (0, b, 0)),
                 pl.BlockSpec((L, B_blk, H), lambda b: (0, b, 0)))
    out_shape = (jax.ShapeDtypeStruct((B_pad, O_pad), jnp.float32),
                 jax.ShapeDtypeStruct((L, B_pad, H), jnp.float32),
                 jax.ShapeDtypeStruct((L, B_pad, H), jnp.float32))
    scratch_shapes = [pltpu.VMEM((T, B_blk, 4 * H), jnp.float32),   # pre-proj
                      pltpu.VMEM((T, B_blk, H), jnp.bfloat16)]      # layer outs

    # Explicit VMEM budget sized from actual residency (+ pipelining margin).
    def nbytes(a):
        return a.size * a.dtype.itemsize
    io_bytes = (sum(nbytes(a) for a in
                    [x_tbe, h0, c0, w_fc_pad, b_fc_pad]
                    + list(w_ih) + list(w_hh) + list(bias))
                + B_pad * O_pad * 4 + 2 * L * B_pad * H * 4)
    scr_bytes = T * B_blk * 4 * H * 4 + T * B_blk * H * 2
    vmem_limit = int(min(100 * 1024 * 1024,
                         2 * io_bytes + scr_bytes + (4 << 20)))

    return pl.pallas_call(
        kernel,
        out_shape=out_shape,
        grid_spec=pltpu.PrefetchScalarGridSpec(
            num_scalar_prefetch=0,
            grid=(n_blk,),
            in_specs=in_specs,
            out_specs=out_specs,
            scratch_shapes=scratch_shapes),
        compiler_params=pltpu.CompilerParams(
            dimension_semantics=("parallel",),
            vmem_limit_bytes=vmem_limit),
    )(x_tbe, h0, c0, *w_ih, *w_hh, *bias, w_fc_pad, b_fc_pad)


# -----------------------------------------------------------------------------
# Parameter construction (deterministic, PyTorch-like uniform init).
# PyTorch gate row order (i, f, g, o) is reordered to (i, f, o, g).
# -----------------------------------------------------------------------------
def init_params(key, vocab_size, output_size, embedding_dim, hidden_dim,
                n_layers):
    H = hidden_dim
    keys = jax.random.split(key, 4 * n_layers + 3)
    ki = iter(keys)
    params = {"output_size": output_size, "hidden_dim": H, "n_layers": n_layers}
    params["embed"] = jax.random.normal(next(ki), (vocab_size, embedding_dim),
                                        jnp.float32)

    bound = 1.0 / math.sqrt(H)
    perm = jnp.concatenate([jnp.arange(0, H), jnp.arange(H, 2 * H),
                            jnp.arange(3 * H, 4 * H), jnp.arange(2 * H, 3 * H)])
    w_ih, w_hh, bias = [], [], []
    for layer in range(n_layers):
        in_dim = embedding_dim if layer == 0 else H
        wih = jax.random.uniform(next(ki), (4 * H, in_dim), jnp.float32,
                                 -bound, bound)
        whh = jax.random.uniform(next(ki), (4 * H, H), jnp.float32,
                                 -bound, bound)
        b_ih = jax.random.uniform(next(ki), (4 * H,), jnp.float32,
                                  -bound, bound)
        b_hh = jax.random.uniform(next(ki), (4 * H,), jnp.float32,
                                  -bound, bound)
        w_ih.append(wih[perm].T.astype(jnp.bfloat16))      # (in_dim, 4H) bf16
        w_hh.append(whh[perm].T.astype(jnp.bfloat16))      # (H, 4H)      bf16
        bias.append((b_ih + b_hh)[perm][None, :])          # (1, 4H)      f32
    params["w_ih"], params["w_hh"], params["bias"] = w_ih, w_hh, bias

    w_fc = jax.random.uniform(next(ki), (output_size, H), jnp.float32,
                              -bound, bound)
    b_fc = jax.random.uniform(next(ki), (output_size,), jnp.float32,
                              -bound, bound)
    o_pad = max(128, ((output_size + 127) // 128) * 128)   # lane-dense FC out
    params["w_fc_pad"] = jnp.pad(
        w_fc.T, ((0, 0), (0, o_pad - output_size))).astype(jnp.bfloat16)
    params["b_fc_pad"] = jnp.pad(b_fc[None, :],
                                 ((0, 0), (0, o_pad - output_size)))
    return params


# -----------------------------------------------------------------------------
# Forward pass (mirrors RNN.forward): embed -> fused LSTM stack + fc(last step)
# -----------------------------------------------------------------------------
def rnn_forward(params, tokens, hidden):
    h0, c0 = hidden                                        # each (L, B, H) f32
    B = tokens.shape[0]
    O = params["output_size"]
    # Embedding gather directly in time-major order; bf16 for the MXU LHS.
    x = jnp.take(params["embed"], tokens.T, axis=0).astype(jnp.bfloat16)
    # Pad batch to the f32 sublane granule (8) so no sublane-masked VPU/stores.
    B_pad = max(8, ((B + 7) // 8) * 8)
    pad = B_pad - B
    if pad:
        x = jnp.pad(x, ((0, 0), (0, pad), (0, 0)))
        h0 = jnp.pad(h0, ((0, 0), (0, pad), (0, 0)))
        c0 = jnp.pad(c0, ((0, 0), (0, pad), (0, 0)))
    # TODO(synk): inter-layer LSTM dropout (p=0.5) omitted — eval/inference
    # semantics only.
    out_pad, hN, cN = fused_lstm_fc(x, h0, c0, params["w_ih"], params["w_hh"],
                                    params["bias"], params["w_fc_pad"],
                                    params["b_fc_pad"])
    return out_pad[:B, :O], (hN[:, :B], cN[:, :B])


# -----------------------------------------------------------------------------
# Pure-JAX reference with identical math (same bf16 operands, f32 accum/state).
# -----------------------------------------------------------------------------
def rnn_reference(params, tokens, hidden):
    h0, c0 = hidden
    L, B, H = h0.shape
    O = params["output_size"]
    x = jnp.take(params["embed"], tokens.T, axis=0).astype(jnp.bfloat16)
    T = x.shape[0]
    hs = [h0[l] for l in range(L)]
    cs = [c0[l] for l in range(L)]
    layer_in = x
    for l in range(L):
        in_dim = layer_in.shape[-1]
        pre = (jnp.dot(layer_in.reshape(T * B, in_dim), params["w_ih"][l],
                       preferred_element_type=jnp.float32)
               + params["bias"][l]).reshape(T, B, 4 * H)
        h, c = hs[l], cs[l]
        outs = []
        for t in range(T):
            gates = pre[t] + jnp.dot(h.astype(jnp.bfloat16), params["w_hh"][l],
                                     preferred_element_type=jnp.float32)
            sig = jax.nn.sigmoid(gates[:, :3 * H])
            g = jnp.tanh(gates[:, 3 * H:])
            i, f, o = sig[:, :H], sig[:, H:2 * H], sig[:, 2 * H:3 * H]
            c = f * c + i * g
            h = o * jnp.tanh(c)
            outs.append(h)
        hs[l], cs[l] = h, c
        layer_in = jnp.stack(outs, axis=0).astype(jnp.bfloat16)
    out = (jnp.dot(hs[-1].astype(jnp.bfloat16), params["w_fc_pad"],
                   preferred_element_type=jnp.float32) + params["b_fc_pad"])
    return out[:, :O], (jnp.stack(hs, 0), jnp.stack(cs, 0))


if __name__ == "__main__":
    vocab_size = 50
    output_size = 10
    embedding_dim = 32
    hidden_dim = 32
    n_layers = 2
    batch = 2
    seq = 8

    key = jax.random.PRNGKey(0)
    k_param, k_tok = jax.random.split(key)
    params = init_params(k_param, vocab_size, output_size,
                         embedding_dim, hidden_dim, n_layers)

    tokens = jax.random.randint(k_tok, (batch, seq), 0, vocab_size, jnp.int32)
    # init_hidden: zeros of shape (n_layers, batch, hidden_dim) for (h, c)
    hidden = (jnp.zeros((n_layers, batch, hidden_dim), jnp.float32),
              jnp.zeros((n_layers, batch, hidden_dim), jnp.float32))

    out, (hN, cN) = rnn_forward(params, tokens, hidden)
    jax.block_until_ready((out, hN, cN))

    assert out.shape == (batch, output_size)
    assert hN.shape == (n_layers, batch, hidden_dim)
    assert cN.shape == (n_layers, batch, hidden_dim)

    # Correctness check against the pure-JAX reference (same math).
    ref_out, (ref_h, ref_c) = rnn_reference(params, tokens, hidden)
    assert jnp.allclose(out, ref_out, atol=5e-4, rtol=1e-3), \
        float(jnp.max(jnp.abs(out - ref_out)))
    assert jnp.allclose(hN, ref_h, atol=5e-4, rtol=1e-3)
    assert jnp.allclose(cN, ref_c, atol=5e-4, rtol=1e-3)

    print("KERNEL_OK")
</pallas_src>

<mosaic_0001>
module attributes {stable_mosaic.version = 11 : i64} {
  func.func @kernel(%arg0: i32, %arg1: memref<8x8x32xbf16, #tpu.memory_space<vmem>>, %arg2: memref<2x8x32xf32, #tpu.memory_space<vmem>>, %arg3: memref<2x8x32xf32, #tpu.memory_space<vmem>>, %arg4: memref<32x128xbf16, #tpu.memory_space<vmem>>, %arg5: memref<32x128xbf16, #tpu.memory_space<vmem>>, %arg6: memref<32x128xbf16, #tpu.memory_space<vmem>>, %arg7: memref<32x128xbf16, #tpu.memory_space<vmem>>, %arg8: memref<1x128xf32, #tpu.memory_space<vmem>>, %arg9: memref<1x128xf32, #tpu.memory_space<vmem>>, %arg10: memref<32x128xbf16, #tpu.memory_space<vmem>>, %arg11: memref<1x128xf32, #tpu.memory_space<vmem>>, %arg12: memref<8x128xf32, #tpu.memory_space<vmem>>, %arg13: memref<2x8x32xf32, #tpu.memory_space<vmem>>, %arg14: memref<2x8x32xf32, #tpu.memory_space<vmem>>, %arg15: memref<8x8x128xf32, #tpu.memory_space<vmem>>, %arg16: memref<8x8x32xbf16, #tpu.memory_space<vmem>>) attributes {dimension_semantics = [#tpu.dimension_semantics<parallel>], iteration_bounds = array<i64: 1>, scalar_prefetch = 0 : i64, scratch_operands = 2 : i64, tpu.core_type = #tpu.core_type<tc>, window_params = [{transform_indices = @transform_0, window_bounds = array<i64: 8, 8, 32>}, {transform_indices = @transform_1, window_bounds = array<i64: 2, 8, 32>}, {transform_indices = @transform_2, window_bounds = array<i64: 2, 8, 32>}, {pipeline_mode = #tpu.pipeline_mode<synchronous>, transform_indices = @transform_3, window_bounds = array<i64: 32, 128>}, {pipeline_mode = #tpu.pipeline_mode<synchronous>, transform_indices = @transform_4, window_bounds = array<i64: 32, 128>}, {pipeline_mode = #tpu.pipeline_mode<synchronous>, transform_indices = @transform_5, window_bounds = array<i64: 32, 128>}, {pipeline_mode = #tpu.pipeline_mode<synchronous>, transform_indices = @transform_6, window_bounds = array<i64: 32, 128>}, {pipeline_mode = #tpu.pipeline_mode<synchronous>, transform_indices = @transform_7, window_bounds = array<i64: 1, 128>}, {pipeline_mode = #tpu.pipeline_mode<synchronous>, transform_indices = @transform_8, window_bounds = array<i64: 1, 128>}, {pipeline_mode = #tpu.pipeline_mode<synchronous>, transform_indices = @transform_9, window_bounds = array<i64: 32, 128>}, {pipeline_mode = #tpu.pipeline_mode<synchronous>, transform_indices = @transform_10, window_bounds = array<i64: 1, 128>}, {transform_indices = @transform_11, window_bounds = array<i64: 8, 128>}, {transform_indices = @transform_12, window_bounds = array<i64: 2, 8, 32>}, {transform_indices = @transform_13, window_bounds = array<i64: 2, 8, 32>}]} {
    %c0 = arith.constant 0 : index
    %c0_0 = arith.constant 0 : index
    %c0_1 = arith.constant 0 : index
    %0 = vector.load %arg1[%c0, %c0_0, %c0_1] : memref<8x8x32xbf16, #tpu.memory_space<vmem>>, vector<8x8x32xbf16>
    %1 = vector.shape_cast %0 : vector<8x8x32xbf16> to vector<64x32xbf16>
    %c0_2 = arith.constant 0 : index
    %c0_3 = arith.constant 0 : index
    %2 = vector.load %arg4[%c0_2, %c0_3] : memref<32x128xbf16, #tpu.memory_space<vmem>>, vector<32x128xbf16>
    %cst = arith.constant dense<0.000000e+00> : vector<64x128xf32>
    %3 = tpu.matmul %1, %2, %cst {dimension_numbers = #tpu.dot_dimension_numbers<[1], [0], [0], [1], [0, 0, 1, 1], [], []>} : vector<64x32xbf16>, vector<32x128xbf16>, vector<64x128xf32> -> vector<64x128xf32>
    %c0_4 = arith.constant 0 : index
    %c0_5 = arith.constant 0 : index
    %4 = vector.load %arg8[%c0_4, %c0_5] : memref<1x128xf32, #tpu.memory_space<vmem>>, vector<1x128xf32>
    %5 = vector.broadcast %4 : vector<1x128xf32> to vector<64x128xf32>
    %6 = arith.addf %3, %5 : vector<64x128xf32>
    %7 = vector.shape_cast %6 : vector<64x128xf32> to vector<8x8x128xf32>
    %c0_6 = arith.constant 0 : index
    %c0_7 = arith.constant 0 : index
    %c0_8 = arith.constant 0 : index
    %8 = vector.load %arg15[%c0_6, %c0_7, %c0_8] : memref<8x8x128xf32, #tpu.memory_space<vmem>>, vector<8x8x128xf32>
    tpu.vector_store %arg15[%c0_6, %c0_7, %c0_8], %7 {strides = array<i32>} : memref<8x8x128xf32, #tpu.memory_space<vmem>>, vector<8x8x128xf32>,
    %c0_9 = arith.constant 0 : index
    %c0_10 = arith.constant 0 : index
    %9 = vector.load %arg6[%c0_9, %c0_10] : memref<32x128xbf16, #tpu.memory_space<vmem>>, vector<32x128xbf16>
    %c0_11 = arith.constant 0 : index
    %c0_12 = arith.constant 0 : index
    %c0_13 = arith.constant 0 : index
    %10 = vector.load %arg2[%c0_11, %c0_12, %c0_13] : memref<2x8x32xf32, #tpu.memory_space<vmem>>, vector<1x8x32xf32>
    %11 = vector.shape_cast %10 : vector<1x8x32xf32> to vector<8x32xf32>
    %c0_14 = arith.constant 0 : index
    %c0_15 = arith.constant 0 : index
    %c0_16 = arith.constant 0 : index
    %12 = vector.load %arg3[%c0_14, %c0_15, %c0_16] : memref<2x8x32xf32, #tpu.memory_space<vmem>>, vector<1x8x32xf32>
    %13 = vector.shape_cast %12 : vector<1x8x32xf32> to vector<8x32xf32>
    %c0_i32 = arith.constant 0 : i32
    %14 = arith.index_cast %c0_i32 : i32 to index
    %c0_17 = arith.constant 0 : index
    %c0_18 = arith.constant 0 : index
    %15 = vector.load %arg15[%14, %c0_17, %c0_18] : memref<8x8x128xf32, #tpu.memory_space<vmem>>, vector<1x8x128xf32>
    %16 = vector.shape_cast %15 : vector<1x8x128xf32> to vector<8x128xf32>
    %17 = arith.truncf %11 : vector<8x32xf32> to vector<8x32xbf16>
    %cst_19 = arith.constant dense<0.000000e+00> : vector<8x128xf32>
    %18 = tpu.matmul %17, %9, %cst_19 {dimension_numbers = #tpu.dot_dimension_numbers<[1], [0], [0], [1], [0, 0, 1, 1], [], []>} : vector<8x32xbf16>, vector<32x128xbf16>, vector<8x128xf32> -> vector<8x128xf32>
    %19 = arith.addf %16, %18 : vector<8x128xf32>
    %20 = vector.extract_strided_slice %19 {offsets = [0, 0], sizes = [8, 96], strides = [1, 1]} : vector<8x128xf32> to vector<8x96xf32>
    %21 = arith.negf %20 : vector<8x96xf32>
    %22 = math.exp %21 : vector<8x96xf32>
    %cst_20 = arith.constant 1.000000e+00 : f32
    %23 = vector.broadcast %cst_20 : f32 to vector<8x96xf32>
    %24 = arith.addf %23, %22 : vector<8x96xf32>
    %25 = arith.divf %23, %24 : vector<8x96xf32>
    %26 = vector.extract_strided_slice %19 {offsets = [0, 96], sizes = [8, 32], strides = [1, 1]} : vector<8x128xf32> to vector<8x32xf32>
    %27 = math.tanh %26 : vector<8x32xf32>
    %28 = vector.extract_strided_slice %25 {offsets = [0, 0], sizes = [8, 32], strides = [1, 1]} : vector<8x96xf32> to vector<8x32xf32>
    %29 = vector.extract_strided_slice %25 {offsets = [0, 32], sizes = [8, 32], strides = [1, 1]} : vector<8x96xf32> to vector<8x32xf32>
    %30 = vector.extract_strided_slice %25 {offsets = [0, 64], sizes = [8, 32], strides = [1, 1]} : vector<8x96xf32> to vector<8x32xf32>
    %31 = arith.mulf %29, %13 : vector<8x32xf32>
    %32 = arith.mulf %28, %27 : vector<8x32xf32>
    %33 = arith.addf %31, %32 : vector<8x32xf32>
    %34 = math.tanh %33 : vector<8x32xf32>
    %35 = arith.mulf %30, %34 : vector<8x32xf32>
    %36 = arith.truncf %35 : vector<8x32xf32> to vector<8x32xbf16>
    %37 = arith.index_cast %c0_i32 : i32 to index
    %c0_21 = arith.constant 0 : index
    %c0_22 = arith.constant 0 : index
    %38 = vector.load %arg16[%37, %c0_21, %c0_22] : memref<8x8x32xbf16, #tpu.memory_space<vmem>>, vector<1x8x32xbf16>
    %39 = vector.shape_cast %38 : vector<1x8x32xbf16> to vector<8x32xbf16>
    %40 = vector.shape_cast %36 : vector<8x32xbf16> to vector<1x8x32xbf16>
    tpu.vector_store %arg16[%37, %c0_21, %c0_22], %40 {strides = array<i32>} : memref<8x8x32xbf16, #tpu.memory_space<vmem>>, vector<1x8x32xbf16>,
    %c1_i32 = arith.constant 1 : i32
    %41 = arith.index_cast %c1_i32 : i32 to index
    %c0_23 = arith.constant 0 : index
    %c0_24 = arith.constant 0 : index
    %42 = vector.load %arg15[%41, %c0_23, %c0_24] : memref<8x8x128xf32, #tpu.memory_space<vmem>>, vector<1x8x128xf32>
    %43 = vector.shape_cast %42 : vector<1x8x128xf32> to vector<8x128xf32>
    %44 = arith.truncf %35 : vector<8x32xf32> to vector<8x32xbf16>
    %cst_25 = arith.constant dense<0.000000e+00> : vector<8x128xf32>
    %45 = tpu.matmul %44, %9, %cst_25 {dimension_numbers = #tpu.dot_dimension_numbers<[1], [0], [0], [1], [0, 0, 1, 1], [], []>} : vector<8x32xbf16>, vector<32x128xbf16>, vector<8x128xf32> -> vector<8x128xf32>
    %46 = arith.addf %43, %45 : vector<8x128xf32>
    %47 = vector.extract_strided_slice %46 {offsets = [0, 0], sizes = [8, 96], strides = [1, 1]} : vector<8x128xf32> to vector<8x96xf32>
    %48 = arith.negf %47 : vector<8x96xf32>
    %49 = math.exp %48 : vector<8x96xf32>
    %cst_26 = arith.constant 1.000000e+00 : f32
    %50 = vector.broadcast %cst_26 : f32 to vector<8x96xf32>
    %51 = arith.addf %50, %49 : vector<8x96xf32>
    %52 = arith.divf %50, %51 : vector<8x96xf32>
    %53 = vector.extract_strided_slice %46 {offsets = [0, 96], sizes = [8, 32], strides = [1, 1]} : vector<8x128xf32> to vector<8x32xf32>
    %54 = math.tanh %53 : vector<8x32xf32>
    %55 = vector.extract_strided_slice %52 {offsets = [0, 0], sizes = [8, 32], strides = [1, 1]} : vector<8x96xf32> to vector<8x32xf32>
    %56 = vector.extract_strided_slice %52 {offsets = [0, 32], sizes = [8, 32], strides = [1, 1]} : vector<8x96xf32> to vector<8x32xf32>
    %57 = vector.extract_strided_slice %52 {offsets = [0, 64], sizes = [8, 32], strides = [1, 1]} : vector<8x96xf32> to vector<8x32xf32>
    %58 = arith.mulf %56, %33 : vector<8x32xf32>
    %59 = arith.mulf %55, %54 : vector<8x32xf32>
    %60 = arith.addf %58, %59 : vector<8x32xf32>
    %61 = math.tanh %60 : vector<8x32xf32>
    %62 = arith.mulf %57, %61 : vector<8x32xf32>
    %63 = arith.truncf %62 : vector<8x32xf32> to vector<8x32xbf16>
    %64 = arith.index_cast %c1_i32 : i32 to index
    %c0_27 = arith.constant 0 : index
    %c0_28 = arith.constant 0 : index
    %65 = vector.load %arg16[%64, %c0_27, %c0_28] : memref<8x8x32xbf16, #tpu.memory_space<vmem>>, vector<1x8x32xbf16>
    %66 = vector.shape_cast %65 : vector<1x8x32xbf16> to vector<8x32xbf16>
    %67 = vector.shape_cast %63 : vector<8x32xbf16> to vector<1x8x32xbf16>
    tpu.vector_store %arg16[%64, %c0_27, %c0_28], %67 {strides = array<i32>} : memref<8x8x32xbf16, #tpu.memory_space<vmem>>, vector<1x8x32xbf16>,
    %c2_i32 = arith.constant 2 : i32
    %68 = arith.index_cast %c2_i32 : i32 to index
    %c0_29 = arith.constant 0 : index
    %c0_30 = arith.constant 0 : index
    %69 = vector.load %arg15[%68, %c0_29, %c0_30] : memref<8x8x128xf32, #tpu.memory_space<vmem>>, vector<1x8x128xf32>
    %70 = vector.shape_cast %69 : vector<1x8x128xf32> to vector<8x128xf32>
    %71 = arith.truncf %62 : vector<8x32xf32> to vector<8x32xbf16>
    %cst_31 = arith.constant dense<0.000000e+00> : vector<8x128xf32>
    %72 = tpu.matmul %71, %9, %cst_31 {dimension_numbers = #tpu.dot_dimension_numbers<[1], [0], [0], [1], [0, 0, 1, 1], [], []>} : vector<8x32xbf16>, vector<32x128xbf16>, vector<8x128xf32> -> vector<8x128xf32>
    %73 = arith.addf %70, %72 : vector<8x128xf32>
    %74 = vector.extract_strided_slice %73 {offsets = [0, 0], sizes = [8, 96], strides = [1, 1]} : vector<8x128xf32> to vector<8x96xf32>
    %75 = arith.negf %74 : vector<8x96xf32>
    %76 = math.exp %75 : vector<8x96xf32>
    %cst_32 = arith.constant 1.000000e+00 : f32
    %77 = vector.broadcast %cst_32 : f32 to vector<8x96xf32>
    %78 = arith.addf %77, %76 : vector<8x96xf32>
    %79 = arith.divf %77, %78 : vector<8x96xf32>
    %80 = vector.extract_strided_slice %73 {offsets = [0, 96], sizes = [8, 32], strides = [1, 1]} : vector<8x128xf32> to vector<8x32xf32>
    %81 = math.tanh %80 : vector<8x32xf32>
    %82 = vector.extract_strided_slice %79 {offsets = [0, 0], sizes = [8, 32], strides = [1, 1]} : vector<8x96xf32> to vector<8x32xf32>
    %83 = vector.extract_strided_slice %79 {offsets = [0, 32], sizes = [8, 32], strides = [1, 1]} : vector<8x96xf32> to vector<8x32xf32>
    %84 = vector.extract_strided_slice %79 {offsets = [0, 64], sizes = [8, 32], strides = [1, 1]} : vector<8x96xf32> to vector<8x32xf32>
    %85 = arith.mulf %83, %60 : vector<8x32xf32>
    %86 = arith.mulf %82, %81 : vector<8x32xf32>
    %87 = arith.addf %85, %86 : vector<8x32xf32>
    %88 = math.tanh %87 : vector<8x32xf32>
    %89 = arith.mulf %84, %88 : vector<8x32xf32>
    %90 = arith.truncf %89 : vector<8x32xf32> to vector<8x32xbf16>
    %91 = arith.index_cast %c2_i32 : i32 to index
    %c0_33 = arith.constant 0 : index
    %c0_34 = arith.constant 0 : index
    %92 = vector.load %arg16[%91, %c0_33, %c0_34] : memref<8x8x32xbf16, #tpu.memory_space<vmem>>, vector<1x8x32xbf16>
    %93 = vector.shape_cast %92 : vector<1x8x32xbf16> to vector<8x32xbf16>
    %94 = vector.shape_cast %90 : vector<8x32xbf16> to vector<1x8x32xbf16>
    tpu.vector_store %arg16[%91, %c0_33, %c0_34], %94 {strides = array<i32>} : memref<8x8x32xbf16, #tpu.memory_space<vmem>>, vector<1x8x32xbf16>,
    %c3_i32 = arith.constant 3 : i32
    %95 = arith.index_cast %c3_i32 : i32 to index
    %c0_35 = arith.constant 0 : index
    %c0_36 = arith.constant 0 : index
    %96 = vector.load %arg15[%95, %c0_35, %c0_36] : memref<8x8x128xf32, #tpu.memory_space<vmem>>, vector<1x8x128xf32>
    %97 = vector.shape_cast %96 : vector<1x8x128xf32> to vector<8x128xf32>
    %98 = arith.truncf %89 : vector<8x32xf32> to vector<8x32xbf16>
    %cst_37 = arith.constant dense<0.000000e+00> : vector<8x128xf32>
    %99 = tpu.matmul %98, %9, %cst_37 {dimension_numbers = #tpu.dot_dimension_numbers<[1], [0], [0], [1], [0, 0, 1, 1], [], []>} : vector<8x32xbf16>, vector<32x128xbf16>, vector<8x128xf32> -> vector<8x128xf32>
    %100 = arith.addf %97, %99 : vector<8x128xf32>
    %101 = vector.extract_strided_slice %100 {offsets = [0, 0], sizes = [8, 96], strides = [1, 1]} : vector<8x128xf32> to vector<8x96xf32>
    %102 = arith.negf %101 : vector<8x96xf32>
    %103 = math.exp %102 : vector<8x96xf32>
    %cst_38 = arith.constant 1.000000e+00 : f32
    %104 = vector.broadcast %cst_38 : f32 to vector<8x96xf32>
    %105 = arith.addf %104, %103 : vector<8x96xf32>
    %106 = arith.divf %104, %105 : vector<8x96xf32>
    %107 = vector.extract_strided_slice %100 {offsets = [0, 96], sizes = [8, 32], strides = [1, 1]} : vector<8x128xf32> to vector<8x32xf32>
    %108 = math.tanh %107 : vector<8x32xf32>
    %109 = vector.extract_strided_slice %106 {offsets = [0, 0], sizes = [8, 32], strides = [1, 1]} : vector<8x96xf32> to vector<8x32xf32>
    %110 = vector.extract_strided_slice %106 {offsets = [0, 32], sizes = [8, 32], strides = [1, 1]} : vector<8x96xf32> to vector<8x32xf32>
    %111 = vector.extract_strided_slice %106 {offsets = [0, 64], sizes = [8, 32], strides = [1, 1]} : vector<8x96xf32> to vector<8x32xf32>
    %112 = arith.mulf %110, %87 : vector<8x32xf32>
    %113 = arith.mulf %109, %108 : vector<8x32xf32>
    %114 = arith.addf %112, %113 : vector<8x32xf32>
    %115 = math.tanh %114 : vector<8x32xf32>
    %116 = arith.mulf %111, %115 : vector<8x32xf32>
    %117 = arith.truncf %116 : vector<8x32xf32> to vector<8x32xbf16>
    %118 = arith.index_cast %c3_i32 : i32 to index
    %c0_39 = arith.constant 0 : index
    %c0_40 = arith.constant 0 : index
    %119 = vector.load %arg16[%118, %c0_39, %c0_40] : memref<8x8x32xbf16, #tpu.memory_space<vmem>>, vector<1x8x32xbf16>
    %120 = vector.shape_cast %119 : vector<1x8x32xbf16> to vector<8x32xbf16>
    %121 = vector.shape_cast %117 : vector<8x32xbf16> to vector<1x8x32xbf16>
    tpu.vector_store %arg16[%118, %c0_39, %c0_40], %121 {strides = array<i32>} : memref<8x8x32xbf16, #tpu.memory_space<vmem>>, vector<1x8x32xbf16>,
    %c4_i32 = arith.constant 4 : i32
    %122 = arith.index_cast %c4_i32 : i32 to index
    %c0_41 = arith.constant 0 : index
    %c0_42 = arith.constant 0 : index
    %123 = vector.load %arg15[%122, %c0_41, %c0_42] : memref<8x8x128xf32, #tpu.memory_space<vmem>>, vector<1x8x128xf32>
    %124 = vector.shape_cast %123 : vector<1x8x128xf32> to vector<8x128xf32>
    %125 = arith.truncf %116 : vector<8x32xf32> to vector<8x32xbf16>
    %cst_43 = arith.constant dense<0.000000e+00> : vector<8x128xf32>
    %126 = tpu.matmul %125, %9, %cst_43 {dimension_numbers = #tpu.dot_dimension_numbers<[1], [0], [0], [1], [0, 0, 1, 1], [], []>} : vector<8x32xbf16>, vector<32x128xbf16>, vector<8x128xf32> -> vector<8x128xf32>
    %127 = arith.addf %124, %126 : vector<8x128xf32>
    %128 = vector.extract_strided_slice %127 {offsets = [0, 0], sizes = [8, 96], strides = [1, 1]} : vector<8x128xf32> to vector<8x96xf32>
    %129 = arith.negf %128 : vector<8x96xf32>
    %130 = math.exp %129 : vector<8x96xf32>
    %cst_44 = arith.constant 1.000000e+00 : f32
    %131 = vector.broadcast %cst_44 : f32 to vector<8x96xf32>
    %132 = arith.addf %131, %130 : vector<8x96xf32>
    %133 = arith.divf %131, %132 : vector<8x96xf32>
    %134 = vector.extract_strided_slice %127 {offsets = [0, 96], sizes = [8, 32], strides = [1, 1]} : vector<8x128xf32> to vector<8x32xf32>
    %135 = math.tanh %134 : vector<8x32xf32>
    %136 = vector.extract_strided_slice %133 {offsets = [0, 0], sizes = [8, 32], strides = [1, 1]} : vector<8x96xf32> to vector<8x32xf32>
    %137 = vector.extract_strided_slice %133 {offsets = [0, 32], sizes = [8, 32], strides = [1, 1]} : vector<8x96xf32> to vector<8x32xf32>
    %138 = vector.extract_strided_slice %133 {offsets = [0, 64], sizes = [8, 32], strides = [1, 1]} : vector<8x96xf32> to vector<8x32xf32>
    %139 = arith.mulf %137, %114 : vector<8x32xf32>
    %140 = arith.mulf %136, %135 : vector<8x32xf32>
    %141 = arith.addf %139, %140 : vector<8x32xf32>
    %142 = math.tanh %141 : vector<8x32xf32>
    %143 = arith.mulf %138, %142 : vector<8x32xf32>
    %144 = arith.truncf %143 : vector<8x32xf32> to vector<8x32xbf16>
    %145 = arith.index_cast %c4_i32 : i32 to index
    %c0_45 = arith.constant 0 : index
    %c0_46 = arith.constant 0 : index
    %146 = vector.load %arg16[%145, %c0_45, %c0_46] : memref<8x8x32xbf16, #tpu.memory_space<vmem>>, vector<1x8x32xbf16>
    %147 = vector.shape_cast %146 : vector<1x8x32xbf16> to vector<8x32xbf16>
    %148 = vector.shape_cast %144 : vector<8x32xbf16> to vector<1x8x32xbf16>
    tpu.vector_store %arg16[%145, %c0_45, %c0_46], %148 {strides = array<i32>} : memref<8x8x32xbf16, #tpu.memory_space<vmem>>, vector<1x8x32xbf16>,
    %c5_i32 = arith.constant 5 : i32
    %149 = arith.index_cast %c5_i32 : i32 to index
    %c0_47 = arith.constant 0 : index
    %c0_48 = arith.constant 0 : index
    %150 = vector.load %arg15[%149, %c0_47, %c0_48] : memref<8x8x128xf32, #tpu.memory_space<vmem>>, vector<1x8x128xf32>
    %151 = vector.shape_cast %150 : vector<1x8x128xf32> to vector<8x128xf32>
    %152 = arith.truncf %143 : vector<8x32xf32> to vector<8x32xbf16>
    %cst_49 = arith.constant dense<0.000000e+00> : vector<8x128xf32>
    %153 = tpu.matmul %152, %9, %cst_49 {dimension_numbers = #tpu.dot_dimension_numbers<[1], [0], [0], [1], [0, 0, 1, 1], [], []>} : vector<8x32xbf16>, vector<32x128xbf16>, vector<8x128xf32> -> vector<8x128xf32>
    %154 = arith.addf %151, %153 : vector<8x128xf32>
    %155 = vector.extract_strided_slice %154 {offsets = [0, 0], sizes = [8, 96], strides = [1, 1]} : vector<8x128xf32> to vector<8x96xf32>
    %156 = arith.negf %155 : vector<8x96xf32>
    %157 = math.exp %156 : vector<8x96xf32>
    %cst_50 = arith.constant 1.000000e+00 : f32
    %158 = vector.broadcast %cst_50 : f32 to vector<8x96xf32>
    %159 = arith.addf %158, %157 : vector<8x96xf32>
    %160 = arith.divf %158, %159 : vector<8x96xf32>
    %161 = vector.extract_strided_slice %154 {offsets = [0, 96], sizes = [8, 32], strides = [1, 1]} : vector<8x128xf32> to vector<8x32xf32>
    %162 = math.tanh %161 : vector<8x32xf32>
    %163 = vector.extract_strided_slice %160 {offsets = [0, 0], sizes = [8, 32], strides = [1, 1]} : vector<8x96xf32> to vector<8x32xf32>
    %164 = vector.extract_strided_slice %160 {offsets = [0, 32], sizes = [8, 32], strides = [1, 1]} : vector<8x96xf32> to vector<8x32xf32>
    %165 = vector.extract_strided_slice %160 {offsets = [0, 64], sizes = [8, 32], strides = [1, 1]} : vector<8x96xf32> to vector<8x32xf32>
    %166 = arith.mulf %164, %141 : vector<8x32xf32>
    %167 = arith.mulf %163, %162 : vector<8x32xf32>
    %168 = arith.addf %166, %167 : vector<8x32xf32>
    %169 = math.tanh %168 : vector<8x32xf32>
    %170 = arith.mulf %165, %169 : vector<8x32xf32>
    %171 = arith.truncf %170 : vector<8x32xf32> to vector<8x32xbf16>
    %172 = arith.index_cast %c5_i32 : i32 to index
    %c0_51 = arith.constant 0 : index
    %c0_52 = arith.constant 0 : index
    %173 = vector.load %arg16[%172, %c0_51, %c0_52] : memref<8x8x32xbf16, #tpu.memory_space<vmem>>, vector<1x8x32xbf16>
    %174 = vector.shape_cast %173 : vector<1x8x32xbf16> to vector<8x32xbf16>
    %175 = vector.shape_cast %171 : vector<8x32xbf16> to vector<1x8x32xbf16>
    tpu.vector_store %arg16[%172, %c0_51, %c0_52], %175 {strides = array<i32>} : memref<8x8x32xbf16, #tpu.memory_space<vmem>>, vector<1x8x32xbf16>,
    %c6_i32 = arith.constant 6 : i32
    %176 = arith.index_cast %c6_i32 : i32 to index
    %c0_53 = arith.constant 0 : index
    %c0_54 = arith.constant 0 : index
    %177 = vector.load %arg15[%176, %c0_53, %c0_54] : memref<8x8x128xf32, #tpu.memory_space<vmem>>, vector<1x8x128xf32>
    %178 = vector.shape_cast %177 : vector<1x8x128xf32> to vector<8x128xf32>
    %179 = arith.truncf %170 : vector<8x32xf32> to vector<8x32xbf16>
    %cst_55 = arith.constant dense<0.000000e+00> : vector<8x128xf32>
    %180 = tpu.matmul %179, %9, %cst_55 {dimension_numbers = #tpu.dot_dimension_numbers<[1], [0], [0], [1], [0, 0, 1, 1], [], []>} : vector<8x32xbf16>, vector<32x128xbf16>, vector<8x128xf32> -> vector<8x128xf32>
    %181 = arith.addf %178, %180 : vector<8x128xf32>
    %182 = vector.extract_strided_slice %181 {offsets = [0, 0], sizes = [8, 96], strides = [1, 1]} : vector<8x128xf32> to vector<8x96xf32>
    %183 = arith.negf %182 : vector<8x96xf32>
    %184 = math.exp %183 : vector<8x96xf32>
    %cst_56 = arith.constant 1.000000e+00 : f32
    %185 = vector.broadcast %cst_56 : f32 to vector<8x96xf32>
    %186 = arith.addf %185, %184 : vector<8x96xf32>
    %187 = arith.divf %185, %186 : vector<8x96xf32>
    %188 = vector.extract_strided_slice %181 {offsets = [0, 96], sizes = [8, 32], strides = [1, 1]} : vector<8x128xf32> to vector<8x32xf32>
    %189 = math.tanh %188 : vector<8x32xf32>
    %190 = vector.extract_strided_slice %187 {offsets = [0, 0], sizes = [8, 32], strides = [1, 1]} : vector<8x96xf32> to vector<8x32xf32>
    %191 = vector.extract_strided_slice %187 {offsets = [0, 32], sizes = [8, 32], strides = [1, 1]} : vector<8x96xf32> to vector<8x32xf32>
    %192 = vector.extract_strided_slice %187 {offsets = [0, 64], sizes = [8, 32], strides = [1, 1]} : vector<8x96xf32> to vector<8x32xf32>
    %193 = arith.mulf %191, %168 : vector<8x32xf32>
    %194 = arith.mulf %190, %189 : vector<8x32xf32>
    %195 = arith.addf %193, %194 : vector<8x32xf32>
    %196 = math.tanh %195 : vector<8x32xf32>
    %197 = arith.mulf %192, %196 : vector<8x32xf32>
    %198 = arith.truncf %197 : vector<8x32xf32> to vector<8x32xbf16>
    %199 = arith.index_cast %c6_i32 : i32 to index
    %c0_57 = arith.constant 0 : index
    %c0_58 = arith.constant 0 : index
    %200 = vector.load %arg16[%199, %c0_57, %c0_58] : memref<8x8x32xbf16, #tpu.memory_space<vmem>>, vector<1x8x32xbf16>
    %201 = vector.shape_cast %200 : vector<1x8x32xbf16> to vector<8x32xbf16>
    %202 = vector.shape_cast %198 : vector<8x32xbf16> to vector<1x8x32xbf16>
    tpu.vector_store %arg16[%199, %c0_57, %c0_58], %202 {strides = array<i32>} : memref<8x8x32xbf16, #tpu.memory_space<vmem>>, vector<1x8x32xbf16>,
    %c7_i32 = arith.constant 7 : i32
    %203 = arith.index_cast %c7_i32 : i32 to index
    %c0_59 = arith.constant 0 : index
    %c0_60 = arith.constant 0 : index
    %204 = vector.load %arg15[%203, %c0_59, %c0_60] : memref<8x8x128xf32, #tpu.memory_space<vmem>>, vector<1x8x128xf32>
    %205 = vector.shape_cast %204 : vector<1x8x128xf32> to vector<8x128xf32>
    %206 = arith.truncf %197 : vector<8x32xf32> to vector<8x32xbf16>
    %cst_61 = arith.constant dense<0.000000e+00> : vector<8x128xf32>
    %207 = tpu.matmul %206, %9, %cst_61 {dimension_numbers = #tpu.dot_dimension_numbers<[1], [0], [0], [1], [0, 0, 1, 1], [], []>} : vector<8x32xbf16>, vector<32x128xbf16>, vector<8x128xf32> -> vector<8x128xf32>
    %208 = arith.addf %205, %207 : vector<8x128xf32>
    %209 = vector.extract_strided_slice %208 {offsets = [0, 0], sizes = [8, 96], strides = [1, 1]} : vector<8x128xf32> to vector<8x96xf32>
    %210 = arith.negf %209 : vector<8x96xf32>
    %211 = math.exp %210 : vector<8x96xf32>
    %cst_62 = arith.constant 1.000000e+00 : f32
    %212 = vector.broadcast %cst_62 : f32 to vector<8x96xf32>
    %213 = arith.addf %212, %211 : vector<8x96xf32>
    %214 = arith.divf %212, %213 : vector<8x96xf32>
    %215 = vector.extract_strided_slice %208 {offsets = [0, 96], sizes = [8, 32], strides = [1, 1]} : vector<8x128xf32> to vector<8x32xf32>
    %216 = math.tanh %215 : vector<8x32xf32>
    %217 = vector.extract_strided_slice %214 {offsets = [0, 0], sizes = [8, 32], strides = [1, 1]} : vector<8x96xf32> to vector<8x32xf32>
    %218 = vector.extract_strided_slice %214 {offsets = [0, 32], sizes = [8, 32], strides = [1, 1]} : vector<8x96xf32> to vector<8x32xf32>
    %219 = vector.extract_strided_slice %214 {offsets = [0, 64], sizes = [8, 32], strides = [1, 1]} : vector<8x96xf32> to vector<8x32xf32>
    %220 = arith.mulf %218, %195 : vector<8x32xf32>
    %221 = arith.mulf %217, %216 : vector<8x32xf32>
    %222 = arith.addf %220, %221 : vector<8x32xf32>
    %223 = math.tanh %222 : vector<8x32xf32>
    %224 = arith.mulf %219, %223 : vector<8x32xf32>
    %225 = arith.truncf %224 : vector<8x32xf32> to vector<8x32xbf16>
    %226 = arith.index_cast %c7_i32 : i32 to index
    %c0_63 = arith.constant 0 : index
    %c0_64 = arith.constant 0 : index
    %227 = vector.load %arg16[%226, %c0_63, %c0_64] : memref<8x8x32xbf16, #tpu.memory_space<vmem>>, vector<1x8x32xbf16>
    %228 = vector.shape_cast %227 : vector<1x8x32xbf16> to vector<8x32xbf16>
    %229 = vector.shape_cast %225 : vector<8x32xbf16> to vector<1x8x32xbf16>
    tpu.vector_store %arg16[%226, %c0_63, %c0_64], %229 {strides = array<i32>} : memref<8x8x32xbf16, #tpu.memory_space<vmem>>, vector<1x8x32xbf16>,
    %c8_i32 = arith.constant 8 : i32
    %c0_65 = arith.constant 0 : index
    %c0_66 = arith.constant 0 : index
    %c0_67 = arith.constant 0 : index
    %230 = vector.load %arg16[%c0_65, %c0_66, %c0_67] : memref<8x8x32xbf16, #tpu.memory_space<vmem>>, vector<8x8x32xbf16>
    %231 = vector.shape_cast %230 : vector<8x8x32xbf16> to vector<64x32xbf16>
    %c0_68 = arith.constant 0 : index
    %c0_69 = arith.constant 0 : index
    %232 = vector.load %arg5[%c0_68, %c0_69] : memref<32x128xbf16, #tpu.memory_space<vmem>>, vector<32x128xbf16>
    %cst_70 = arith.constant dense<0.000000e+00> : vector<64x128xf32>
    %233 = tpu.matmul %231, %232, %cst_70 {dimension_numbers = #tpu.dot_dimension_numbers<[1], [0], [0], [1], [0, 0, 1, 1], [], []>} : vector<64x32xbf16>, vector<32x128xbf16>, vector<64x128xf32> -> vector<64x128xf32>
    %c0_71 = arith.constant 0 : index
    %c0_72 = arith.constant 0 : index
    %234 = vector.load %arg9[%c0_71, %c0_72] : memref<1x128xf32, #tpu.memory_space<vmem>>, vector<1x128xf32>
    %235 = vector.broadcast %234 : vector<1x128xf32> to vector<64x128xf32>
    %236 = arith.addf %233, %235 : vector<64x128xf32>
    %237 = vector.shape_cast %236 : vector<64x128xf32> to vector<8x8x128xf32>
    %c0_73 = arith.constant 0 : index
    %c0_74 = arith.constant 0 : index
    %c0_75 = arith.constant 0 : index
    %238 = vector.load %arg15[%c0_73, %c0_74, %c0_75] : memref<8x8x128xf32, #tpu.memory_space<vmem>>, vector<8x8x128xf32>
    tpu.vector_store %arg15[%c0_73, %c0_74, %c0_75], %237 {strides = array<i32>} : memref<8x8x128xf32, #tpu.memory_space<vmem>>, vector<8x8x128xf32>,
    %c0_76 = arith.constant 0 : index
    %c0_77 = arith.constant 0 : index
    %239 = vector.load %arg7[%c0_76, %c0_77] : memref<32x128xbf16, #tpu.memory_space<vmem>>, vector<32x128xbf16>
    %c1 = arith.constant 1 : index
    %c0_78 = arith.constant 0 : index
    %c0_79 = arith.constant 0 : index
    %240 = vector.load %arg2[%c1, %c0_78, %c0_79] : memref<2x8x32xf32, #tpu.memory_space<vmem>>, vector<1x8x32xf32>
    %241 = vector.shape_cast %240 : vector<1x8x32xf32> to vector<8x32xf32>
    %c1_80 = arith.constant 1 : index
    %c0_81 = arith.constant 0 : index
    %c0_82 = arith.constant 0 : index
    %242 = vector.load %arg3[%c1_80, %c0_81, %c0_82] : memref<2x8x32xf32, #tpu.memory_space<vmem>>, vector<1x8x32xf32>
    %243 = vector.shape_cast %242 : vector<1x8x32xf32> to vector<8x32xf32>
    %c0_i32_83 = arith.constant 0 : i32
    %244 = arith.index_cast %c0_i32_83 : i32 to index
    %c0_84 = arith.constant 0 : index
    %c0_85 = arith.constant 0 : index
    %245 = vector.load %arg15[%244, %c0_84, %c0_85] : memref<8x8x128xf32, #tpu.memory_space<vmem>>, vector<1x8x128xf32>
    %246 = vector.shape_cast %245 : vector<1x8x128xf32> to vector<8x128xf32>
    %247 = arith.truncf %241 : vector<8x32xf32> to vector<8x32xbf16>
    %cst_86 = arith.constant dense<0.000000e+00> : vector<8x128xf32>
    %248 = tpu.matmul %247, %239, %cst_86 {dimension_numbers = #tpu.dot_dimension_numbers<[1], [0], [0], [1], [0, 0, 1, 1], [], []>} : vector<8x32xbf16>, vector<32x128xbf16>, vector<8x128xf32> -> vector<8x128xf32>
    %249 = arith.addf %246, %248 : vector<8x128xf32>
    %250 = vector.extract_strided_slice %249 {offsets = [0, 0], sizes = [8, 96], strides = [1, 1]} : vector<8x128xf32> to vector<8x96xf32>
    %251 = arith.negf %250 : vector<8x96xf32>
    %252 = math.exp %251 : vector<8x96xf32>
    %cst_87 = arith.constant 1.000000e+00 : f32
    %253 = vector.broadcast %cst_87 : f32 to vector<8x96xf32>
    %254 = arith.addf %253, %252 : vector<8x96xf32>
    %255 = arith.divf %253, %254 : vector<8x96xf32>
    %256 = vector.extract_strided_slice %249 {offsets = [0, 96], sizes = [8, 32], strides = [1, 1]} : vector<8x128xf32> to vector<8x32xf32>
    %257 = math.tanh %256 : vector<8x32xf32>
    %258 = vector.extract_strided_slice %255 {offsets = [0, 0], sizes = [8, 32], strides = [1, 1]} : vector<8x96xf32> to vector<8x32xf32>
    %259 = vector.extract_strided_slice %255 {offsets = [0, 32], sizes = [8, 32], strides = [1, 1]} : vector<8x96xf32> to vector<8x32xf32>
    %260 = vector.extract_strided_slice %255 {offsets = [0, 64], sizes = [8, 32], strides = [1, 1]} : vector<8x96xf32> to vector<8x32xf32>
    %261 = arith.mulf %259, %243 : vector<8x32xf32>
    %262 = arith.mulf %258, %257 : vector<8x32xf32>
    %263 = arith.addf %261, %262 : vector<8x32xf32>
    %264 = math.tanh %263 : vector<8x32xf32>
    %265 = arith.mulf %260, %264 : vector<8x32xf32>
    %c1_i32_88 = arith.constant 1 : i32
    %266 = arith.index_cast %c1_i32_88 : i32 to index
    %c0_89 = arith.constant 0 : index
    %c0_90 = arith.constant 0 : index
    %267 = vector.load %arg15[%266, %c0_89, %c0_90] : memref<8x8x128xf32, #tpu.memory_space<vmem>>, vector<1x8x128xf32>
    %268 = vector.shape_cast %267 : vector<1x8x128xf32> to vector<8x128xf32>
    %269 = arith.truncf %265 : vector<8x32xf32> to vector<8x32xbf16>
    %cst_91 = arith.constant dense<0.000000e+00> : vector<8x128xf32>
    %270 = tpu.matmul %269, %239, %cst_91 {dimension_numbers = #tpu.dot_dimension_numbers<[1], [0], [0], [1], [0, 0, 1, 1], [], []>} : vector<8x32xbf16>, vector<32x128xbf16>, vector<8x128xf32> -> vector<8x128xf32>
    %271 = arith.addf %268, %270 : vector<8x128xf32>
    %272 = vector.extract_strided_slice %271 {offsets = [0, 0], sizes = [8, 96], strides = [1, 1]} : vector<8x128xf32> to vector<8x96xf32>
    %273 = arith.negf %272 : vector<8x96xf32>
    %274 = math.exp %273 : vector<8x96xf32>
    %cst_92 = arith.constant 1.000000e+00 : f32
    %275 = vector.broadcast %cst_92 : f32 to vector<8x96xf32>
    %276 = arith.addf %275, %274 : vector<8x96xf32>
    %277 = arith.divf %275, %276 : vector<8x96xf32>
    %278 = vector.extract_strided_slice %271 {offsets = [0, 96], sizes = [8, 32], strides = [1, 1]} : vector<8x128xf32> to vector<8x32xf32>
    %279 = math.tanh %278 : vector<8x32xf32>
    %280 = vector.extract_strided_slice %277 {offsets = [0, 0], sizes = [8, 32], strides = [1, 1]} : vector<8x96xf32> to vector<8x32xf32>
    %281 = vector.extract_strided_slice %277 {offsets = [0, 32], sizes = [8, 32], strides = [1, 1]} : vector<8x96xf32> to vector<8x32xf32>
    %282 = vector.extract_strided_slice %277 {offsets = [0, 64], sizes = [8, 32], strides = [1, 1]} : vector<8x96xf32> to vector<8x32xf32>
    %283 = arith.mulf %281, %263 : vector<8x32xf32>
    %284 = arith.mulf %280, %279 : vector<8x32xf32>
    %285 = arith.addf %283, %284 : vector<8x32xf32>
    %286 = math.tanh %285 : vector<8x32xf32>
    %287 = arith.mulf %282, %286 : vector<8x32xf32>
    %c2_i32_93 = arith.constant 2 : i32
    %288 = arith.index_cast %c2_i32_93 : i32 to index
    %c0_94 = arith.constant 0 : index
    %c0_95 = arith.constant 0 : index
    %289 = vector.load %arg15[%288, %c0_94, %c0_95] : memref<8x8x128xf32, #tpu.memory_space<vmem>>, vector<1x8x128xf32>
    %290 = vector.shape_cast %289 : vector<1x8x128xf32> to vector<8x128xf32>
    %291 = arith.truncf %287 : vector<8x32xf32> to vector<8x32xbf16>
    %cst_96 = arith.constant dense<0.000000e+00> : vector<8x128xf32>
    %292 = tpu.matmul %291, %239, %cst_96 {dimension_numbers = #tpu.dot_dimension_numbers<[1], [0], [0], [1], [0, 0, 1, 1], [], []>} : vector<8x32xbf16>, vector<32x128xbf16>, vector<8x128xf32> -> vector<8x128xf32>
    %293 = arith.addf %290, %292 : vector<8x128xf32>
    %294 = vector.extract_strided_slice %293 {offsets = [0, 0], sizes = [8, 96], strides = [1, 1]} : vector<8x128xf32> to vector<8x96xf32>
    %295 = arith.negf %294 : vector<8x96xf32>
    %296 = math.exp %295 : vector<8x96xf32>
    %cst_97 = arith.constant 1.000000e+00 : f32
    %297 = vector.broadcast %cst_97 : f32 to vector<8x96xf32>
    %298 = arith.addf %297, %296 : vector<8x96xf32>
    %299 = arith.divf %297, %298 : vector<8x96xf32>
    %300 = vector.extract_strided_slice %293 {offsets = [0, 96], sizes = [8, 32], strides = [1, 1]} : vector<8x128xf32> to vector<8x32xf32>
    %301 = math.tanh %300 : vector<8x32xf32>
    %302 = vector.extract_strided_slice %299 {offsets = [0, 0], sizes = [8, 32], strides = [1, 1]} : vector<8x96xf32> to vector<8x32xf32>
    %303 = vector.extract_strided_slice %299 {offsets = [0, 32], sizes = [8, 32], strides = [1, 1]} : vector<8x96xf32> to vector<8x32xf32>
    %304 = vector.extract_strided_slice %299 {offsets = [0, 64], sizes = [8, 32], strides = [1, 1]} : vector<8x96xf32> to vector<8x32xf32>
    %305 = arith.mulf %303, %285 : vector<8x32xf32>
    %306 = arith.mulf %302, %301 : vector<8x32xf32>
    %307 = arith.addf %305, %306 : vector<8x32xf32>
    %308 = math.tanh %307 : vector<8x32xf32>
    %309 = arith.mulf %304, %308 : vector<8x32xf32>
    %c3_i32_98 = arith.constant 3 : i32
    %310 = arith.index_cast %c3_i32_98 : i32 to index
    %c0_99 = arith.constant 0 : index
    %c0_100 = arith.constant 0 : index
    %311 = vector.load %arg15[%310, %c0_99, %c0_100] : memref<8x8x128xf32, #tpu.memory_space<vmem>>, vector<1x8x128xf32>
    %312 = vector.shape_cast %311 : vector<1x8x128xf32> to vector<8x128xf32>
    %313 = arith.truncf %309 : vector<8x32xf32> to vector<8x32xbf16>
    %cst_101 = arith.constant dense<0.000000e+00> : vector<8x128xf32>
    %314 = tpu.matmul %313, %239, %cst_101 {dimension_numbers = #tpu.dot_dimension_numbers<[1], [0], [0], [1], [0, 0, 1, 1], [], []>} : vector<8x32xbf16>, vector<32x128xbf16>, vector<8x128xf32> -> vector<8x128xf32>
    %315 = arith.addf %312, %314 : vector<8x128xf32>
    %316 = vector.extract_strided_slice %315 {offsets = [0, 0], sizes = [8, 96], strides = [1, 1]} : vector<8x128xf32> to vector<8x96xf32>
    %317 = arith.negf %316 : vector<8x96xf32>
    %318 = math.exp %317 : vector<8x96xf32>
    %cst_102 = arith.constant 1.000000e+00 : f32
    %319 = vector.broadcast %cst_102 : f32 to vector<8x96xf32>
    %320 = arith.addf %319, %318 : vector<8x96xf32>
    %321 = arith.divf %319, %320 : vector<8x96xf32>
    %322 = vector.extract_strided_slice %315 {offsets = [0, 96], sizes = [8, 32], strides = [1, 1]} : vector<8x128xf32> to vector<8x32xf32>
    %323 = math.tanh %322 : vector<8x32xf32>
    %324 = vector.extract_strided_slice %321 {offsets = [0, 0], sizes = [8, 32], strides = [1, 1]} : vector<8x96xf32> to vector<8x32xf32>
    %325 = vector.extract_strided_slice %321 {offsets = [0, 32], sizes = [8, 32], strides = [1, 1]} : vector<8x96xf32> to vector<8x32xf32>
    %326 = vector.extract_strided_slice %321 {offsets = [0, 64], sizes = [8, 32], strides = [1, 1]} : vector<8x96xf32> to vector<8x32xf32>
    %327 = arith.mulf %325, %307 : vector<8x32xf32>
    %328 = arith.mulf %324, %323 : vector<8x32xf32>
    %329 = arith.addf %327, %328 : vector<8x32xf32>
    %330 = math.tanh %329 : vector<8x32xf32>
    %331 = arith.mulf %326, %330 : vector<8x32xf32>
    %c4_i32_103 = arith.constant 4 : i32
    %332 = arith.index_cast %c4_i32_103 : i32 to index
    %c0_104 = arith.constant 0 : index
    %c0_105 = arith.constant 0 : index
    %333 = vector.load %arg15[%332, %c0_104, %c0_105] : memref<8x8x128xf32, #tpu.memory_space<vmem>>, vector<1x8x128xf32>
    %334 = vector.shape_cast %333 : vector<1x8x128xf32> to vector<8x128xf32>
    %335 = arith.truncf %331 : vector<8x32xf32> to vector<8x32xbf16>
    %cst_106 = arith.constant dense<0.000000e+00> : vector<8x128xf32>
    %336 = tpu.matmul %335, %239, %cst_106 {dimension_numbers = #tpu.dot_dimension_numbers<[1], [0], [0], [1], [0, 0, 1, 1], [], []>} : vector<8x32xbf16>, vector<32x128xbf16>, vector<8x128xf32> -> vector<8x128xf32>
    %337 = arith.addf %334, %336 : vector<8x128xf32>
    %338 = vector.extract_strided_slice %337 {offsets = [0, 0], sizes = [8, 96], strides = [1, 1]} : vector<8x128xf32> to vector<8x96xf32>
    %339 = arith.negf %338 : vector<8x96xf32>
    %340 = math.exp %339 : vector<8x96xf32>
    %cst_107 = arith.constant 1.000000e+00 : f32
    %341 = vector.broadcast %cst_107 : f32 to vector<8x96xf32>
    %342 = arith.addf %341, %340 : vector<8x96xf32>
    %343 = arith.divf %341, %342 : vector<8x96xf32>
    %344 = vector.extract_strided_slice %337 {offsets = [0, 96], sizes = [8, 32], strides = [1, 1]} : vector<8x128xf32> to vector<8x32xf32>
    %345 = math.tanh %344 : vector<8x32xf32>
    %346 = vector.extract_strided_slice %343 {offsets = [0, 0], sizes = [8, 32], strides = [1, 1]} : vector<8x96xf32> to vector<8x32xf32>
    %347 = vector.extract_strided_slice %343 {offsets = [0, 32], sizes = [8, 32], strides = [1, 1]} : vector<8x96xf32> to vector<8x32xf32>
    %348 = vector.extract_strided_slice %343 {offsets = [0, 64], sizes = [8, 32], strides = [1, 1]} : vector<8x96xf32> to vector<8x32xf32>
    %349 = arith.mulf %347, %329 : vector<8x32xf32>
    %350 = arith.mulf %346, %345 : vector<8x32xf32>
    %351 = arith.addf %349, %350 : vector<8x32xf32>
    %352 = math.tanh %351 : vector<8x32xf32>
    %353 = arith.mulf %348, %352 : vector<8x32xf32>
    %c5_i32_108 = arith.constant 5 : i32
    %354 = arith.index_cast %c5_i32_108 : i32 to index
    %c0_109 = arith.constant 0 : index
    %c0_110 = arith.constant 0 : index
    %355 = vector.load %arg15[%354, %c0_109, %c0_110] : memref<8x8x128xf32, #tpu.memory_space<vmem>>, vector<1x8x128xf32>
    %356 = vector.shape_cast %355 : vector<1x8x128xf32> to vector<8x128xf32>
    %357 = arith.truncf %353 : vector<8x32xf32> to vector<8x32xbf16>
    %cst_111 = arith.constant dense<0.000000e+00> : vector<8x128xf32>
    %358 = tpu.matmul %357, %239, %cst_111 {dimension_numbers = #tpu.dot_dimension_numbers<[1], [0], [0], [1], [0, 0, 1, 1], [], []>} : vector<8x32xbf16>, vector<32x128xbf16>, vector<8x128xf32> -> vector<8x128xf32>
    %359 = arith.addf %356, %358 : vector<8x128xf32>
    %360 = vector.extract_strided_slice %359 {offsets = [0, 0], sizes = [8, 96], strides = [1, 1]} : vector<8x128xf32> to vector<8x96xf32>
    %361 = arith.negf %360 : vector<8x96xf32>
    %362 = math.exp %361 : vector<8x96xf32>
    %cst_112 = arith.constant 1.000000e+00 : f32
    %363 = vector.broadcast %cst_112 : f32 to vector<8x96xf32>
    %364 = arith.addf %363, %362 : vector<8x96xf32>
    %365 = arith.divf %363, %364 : vector<8x96xf32>
    %366 = vector.extract_strided_slice %359 {offsets = [0, 96], sizes = [8, 32], strides = [1, 1]} : vector<8x128xf32> to vector<8x32xf32>
    %367 = math.tanh %366 : vector<8x32xf32>
    %368 = vector.extract_strided_slice %365 {offsets = [0, 0], sizes = [8, 32], strides = [1, 1]} : vector<8x96xf32> to vector<8x32xf32>
    %369 = vector.extract_strided_slice %365 {offsets = [0, 32], sizes = [8, 32], strides = [1, 1]} : vector<8x96xf32> to vector<8x32xf32>
    %370 = vector.extract_strided_slice %365 {offsets = [0, 64], sizes = [8, 32], strides = [1, 1]} : vector<8x96xf32> to vector<8x32xf32>
    %371 = arith.mulf %369, %351 : vector<8x32xf32>
    %372 = arith.mulf %368, %367 : vector<8x32xf32>
    %373 = arith.addf %371, %372 : vector<8x32xf32>
    %374 = math.tanh %373 : vector<8x32xf32>
    %375 = arith.mulf %370, %374 : vector<8x32xf32>
    %c6_i32_113 = arith.constant 6 : i32
    %376 = arith.index_cast %c6_i32_113 : i32 to index
    %c0_114 = arith.constant 0 : index
    %c0_115 = arith.constant 0 : index
    %377 = vector.load %arg15[%376, %c0_114, %c0_115] : memref<8x8x128xf32, #tpu.memory_space<vmem>>, vector<1x8x128xf32>
    %378 = vector.shape_cast %377 : vector<1x8x128xf32> to vector<8x128xf32>
    %379 = arith.truncf %375 : vector<8x32xf32> to vector<8x32xbf16>
    %cst_116 = arith.constant dense<0.000000e+00> : vector<8x128xf32>
    %380 = tpu.matmul %379, %239, %cst_116 {dimension_numbers = #tpu.dot_dimension_numbers<[1], [0], [0], [1], [0, 0, 1, 1], [], []>} : vector<8x32xbf16>, vector<32x128xbf16>, vector<8x128xf32> -> vector<8x128xf32>
    %381 = arith.addf %378, %380 : vector<8x128xf32>
    %382 = vector.extract_strided_slice %381 {offsets = [0, 0], sizes = [8, 96], strides = [1, 1]} : vector<8x128xf32> to vector<8x96xf32>
    %383 = arith.negf %382 : vector<8x96xf32>
    %384 = math.exp %383 : vector<8x96xf32>
    %cst_117 = arith.constant 1.000000e+00 : f32
    %385 = vector.broadcast %cst_117 : f32 to vector<8x96xf32>
    %386 = arith.addf %385, %384 : vector<8x96xf32>
    %387 = arith.divf %385, %386 : vector<8x96xf32>
    %388 = vector.extract_strided_slice %381 {offsets = [0, 96], sizes = [8, 32], strides = [1, 1]} : vector<8x128xf32> to vector<8x32xf32>
    %389 = math.tanh %388 : vector<8x32xf32>
    %390 = vector.extract_strided_slice %387 {offsets = [0, 0], sizes = [8, 32], strides = [1, 1]} : vector<8x96xf32> to vector<8x32xf32>
    %391 = vector.extract_strided_slice %387 {offsets = [0, 32], sizes = [8, 32], strides = [1, 1]} : vector<8x96xf32> to vector<8x32xf32>
    %392 = vector.extract_strided_slice %387 {offsets = [0, 64], sizes = [8, 32], strides = [1, 1]} : vector<8x96xf32> to vector<8x32xf32>
    %393 = arith.mulf %391, %373 : vector<8x32xf32>
    %394 = arith.mulf %390, %389 : vector<8x32xf32>
    %395 = arith.addf %393, %394 : vector<8x32xf32>
    %396 = math.tanh %395 : vector<8x32xf32>
    %397 = arith.mulf %392, %396 : vector<8x32xf32>
    %c7_i32_118 = arith.constant 7 : i32
    %398 = arith.index_cast %c7_i32_118 : i32 to index
    %c0_119 = arith.constant 0 : index
    %c0_120 = arith.constant 0 : index
    %399 = vector.load %arg15[%398, %c0_119, %c0_120] : memref<8x8x128xf32, #tpu.memory_space<vmem>>, vector<1x8x128xf32>
    %400 = vector.shape_cast %399 : vector<1x8x128xf32> to vector<8x128xf32>
    %401 = arith.truncf %397 : vector<8x32xf32> to vector<8x32xbf16>
    %cst_121 = arith.constant dense<0.000000e+00> : vector<8x128xf32>
    %402 = tpu.matmul %401, %239, %cst_121 {dimension_numbers = #tpu.dot_dimension_numbers<[1], [0], [0], [1], [0, 0, 1, 1], [], []>} : vector<8x32xbf16>, vector<32x128xbf16>, vector<8x128xf32> -> vector<8x128xf32>
    %403 = arith.addf %400, %402 : vector<8x128xf32>
    %404 = vector.extract_strided_slice %403 {offsets = [0, 0], sizes = [8, 96], strides = [1, 1]} : vector<8x128xf32> to vector<8x96xf32>
    %405 = arith.negf %404 : vector<8x96xf32>
    %406 = math.exp %405 : vector<8x96xf32>
    %cst_122 = arith.constant 1.000000e+00 : f32
    %407 = vector.broadcast %cst_122 : f32 to vector<8x96xf32>
    %408 = arith.addf %407, %406 : vector<8x96xf32>
    %409 = arith.divf %407, %408 : vector<8x96xf32>
    %410 = vector.extract_strided_slice %403 {offsets = [0, 96], sizes = [8, 32], strides = [1, 1]} : vector<8x128xf32> to vector<8x32xf32>
    %411 = math.tanh %410 : vector<8x32xf32>
    %412 = vector.extract_strided_slice %409 {offsets = [0, 0], sizes = [8, 32], strides = [1, 1]} : vector<8x96xf32> to vector<8x32xf32>
    %413 = vector.extract_strided_slice %409 {offsets = [0, 32], sizes = [8, 32], strides = [1, 1]} : vector<8x96xf32> to vector<8x32xf32>
    %414 = vector.extract_strided_slice %409 {offsets = [0, 64], sizes = [8, 32], strides = [1, 1]} : vector<8x96xf32> to vector<8x32xf32>
    %415 = arith.mulf %413, %395 : vector<8x32xf32>
    %416 = arith.mulf %412, %411 : vector<8x32xf32>
    %417 = arith.addf %415, %416 : vector<8x32xf32>
    %418 = math.tanh %417 : vector<8x32xf32>
    %419 = arith.mulf %414, %418 : vector<8x32xf32>
    %c8_i32_123 = arith.constant 8 : i32
    %420 = arith.truncf %419 : vector<8x32xf32> to vector<8x32xbf16>
    %c0_124 = arith.constant 0 : index
    %c0_125 = arith.constant 0 : index
    %421 = vector.load %arg10[%c0_124, %c0_125] : memref<32x128xbf16, #tpu.memory_space<vmem>>, vector<32x128xbf16>
    %cst_126 = arith.constant dense<0.000000e+00> : vector<8x128xf32>
    %422 = tpu.matmul %420, %421, %cst_126 {dimension_numbers = #tpu.dot_dimension_numbers<[1], [0], [0], [1], [0, 0, 1, 1], [], []>} : vector<8x32xbf16>, vector<32x128xbf16>, vector<8x128xf32> -> vector<8x128xf32>
    %c0_127 = arith.constant 0 : index
    %c0_128 = arith.constant 0 : index
    %423 = vector.load %arg11[%c0_127, %c0_128] : memref<1x128xf32, #tpu.memory_space<vmem>>, vector<1x128xf32>
    %424 = vector.broadcast %423 : vector<1x128xf32> to vector<8x128xf32>
    %425 = arith.addf %422, %424 : vector<8x128xf32>
    %c0_129 = arith.constant 0 : index
    %c0_130 = arith.constant 0 : index
    %426 = vector.load %arg12[%c0_129, %c0_130] : memref<8x128xf32, #tpu.memory_space<vmem>>, vector<8x128xf32>
    tpu.vector_store %arg12[%c0_129, %c0_130], %425 {strides = array<i32>} : memref<8x128xf32, #tpu.memory_space<vmem>>, vector<8x128xf32>,
    %427 = vector.shape_cast %224 : vector<8x32xf32> to vector<1x8x32xf32>
    %428 = vector.shape_cast %419 : vector<8x32xf32> to vector<1x8x32xf32>
    %429 = tpu.concatenate %427, %428 in 0 : vector<1x8x32xf32>, vector<1x8x32xf32> -> vector<2x8x32xf32>
    %c0_131 = arith.constant 0 : index
    %c0_132 = arith.constant 0 : index
    %c0_133 = arith.constant 0 : index
    %430 = vector.load %arg13[%c0_131, %c0_132, %c0_133] : memref<2x8x32xf32, #tpu.memory_space<vmem>>, vector<2x8x32xf32>
    tpu.vector_store %arg13[%c0_131, %c0_132, %c0_133], %429 {strides = array<i32>} : memref<2x8x32xf32, #tpu.memory_space<vmem>>, vector<2x8x32xf32>,
    %431 = vector.shape_cast %222 : vector<8x32xf32> to vector<1x8x32xf32>
    %432 = vector.shape_cast %417 : vector<8x32xf32> to vector<1x8x32xf32>
    %433 = tpu.concatenate %431, %432 in 0 : vector<1x8x32xf32>, vector<1x8x32xf32> -> vector<2x8x32xf32>
    %c0_134 = arith.constant 0 : index
    %c0_135 = arith.constant 0 : index
    %c0_136 = arith.constant 0 : index
    %434 = vector.load %arg14[%c0_134, %c0_135, %c0_136] : memref<2x8x32xf32, #tpu.memory_space<vmem>>, vector<2x8x32xf32>
    tpu.vector_store %arg14[%c0_134, %c0_135, %c0_136], %433 {strides = array<i32>} : memref<2x8x32xf32, #tpu.memory_space<vmem>>, vector<2x8x32xf32>,
    return
  }
  func.func @transform_0(%arg0: i32) -> (i32, i32, i32) {
    %c0_i32 = arith.constant 0 : i32
    %c0_i32_0 = arith.constant 0 : i32
    %c0_i32_1 = arith.constant 0 : i32
    return %c0_i32, %arg0, %c0_i32_0 : i32, i32, i32
  }
  func.func @transform_1(%arg0: i32) -> (i32, i32, i32) {
    %c0_i32 = arith.constant 0 : i32
    %c0_i32_0 = arith.constant 0 : i32
    %c0_i32_1 = arith.constant 0 : i32
    return %c0_i32, %arg0, %c0_i32_0 : i32, i32, i32
  }
  func.func @transform_2(%arg0: i32) -> (i32, i32, i32) {
    %c0_i32 = arith.constant 0 : i32
    %c0_i32_0 = arith.constant 0 : i32
    %c0_i32_1 = arith.constant 0 : i32
    return %c0_i32, %arg0, %c0_i32_0 : i32, i32, i32
  }
  func.func @transform_3(%arg0: i32) -> (i32, i32) {
    %c0_i32 = arith.constant 0 : i32
    %c0_i32_0 = arith.constant 0 : i32
    %c0_i32_1 = arith.constant 0 : i32
    return %c0_i32, %c0_i32_0 : i32, i32
  }
  func.func @transform_4(%arg0: i32) -> (i32, i32) {
    %c0_i32 = arith.constant 0 : i32
    %c0_i32_0 = arith.constant 0 : i32
    %c0_i32_1 = arith.constant 0 : i32
    return %c0_i32, %c0_i32_0 : i32, i32
  }
  func.func @transform_5(%arg0: i32) -> (i32, i32) {
    %c0_i32 = arith.constant 0 : i32
    %c0_i32_0 = arith.constant 0 : i32
    %c0_i32_1 = arith.constant 0 : i32
    return %c0_i32, %c0_i32_0 : i32, i32
  }
  func.func @transform_6(%arg0: i32) -> (i32, i32) {
    %c0_i32 = arith.constant 0 : i32
    %c0_i32_0 = arith.constant 0 : i32
    %c0_i32_1 = arith.constant 0 : i32
    return %c0_i32, %c0_i32_0 : i32, i32
  }
  func.func @transform_7(%arg0: i32) -> (i32, i32) {
    %c0_i32 = arith.constant 0 : i32
    %c0_i32_0 = arith.constant 0 : i32
    %c0_i32_1 = arith.constant 0 : i32
    return %c0_i32, %c0_i32_0 : i32, i32
  }
  func.func @transform_8(%arg0: i32) -> (i32, i32) {
    %c0_i32 = arith.constant 0 : i32
    %c0_i32_0 = arith.constant 0 : i32
    %c0_i32_1 = arith.constant 0 : i32
    return %c0_i32, %c0_i32_0 : i32, i32
  }
  func.func @transform_9(%arg0: i32) -> (i32, i32) {
    %c0_i32 = arith.constant 0 : i32
    %c0_i32_0 = arith.constant 0 : i32
    %c0_i32_1 = arith.constant 0 : i32
    return %c0_i32, %c0_i32_0 : i32, i32
  }
  func.func @transform_10(%arg0: i32) -> (i32, i32) {
    %c0_i32 = arith.constant 0 : i32
    %c0_i32_0 = arith.constant 0 : i32
    %c0_i32_1 = arith.constant 0 : i32
    return %c0_i32, %c0_i32_0 : i32, i32
  }
  func.func @transform_11(%arg0: i32) -> (i32, i32) {
    %c0_i32 = arith.constant 0 : i32
    %c0_i32_0 = arith.constant 0 : i32
    return %arg0, %c0_i32 : i32, i32
  }
  func.func @transform_12(%arg0: i32) -> (i32, i32, i32) {
    %c0_i32 = arith.constant 0 : i32
    %c0_i32_0 = arith.constant 0 : i32
    %c0_i32_1 = arith.constant 0 : i32
    return %c0_i32, %arg0, %c0_i32_0 : i32, i32, i32
  }
  func.func @transform_13(%arg0: i32) -> (i32, i32, i32) {
    %c0_i32 = arith.constant 0 : i32
    %c0_i32_0 = arith.constant 0 : i32
    %c0_i32_1 = arith.constant 0 : i32
    return %c0_i32, %arg0, %c0_i32_0 : i32, i32, i32
  }
}

</mosaic_0001>

<llo_original>
// kernel: tpu_custom_call.1
$region0: #{tpu_custom_call.1}
  #allocation0 [shape = 'u32[]', space=smem, size = 0x4, offset = 0x4, fixed_abs, tag = 'smem constant byte address 0x4 - core index']
  #allocation1 [shape = 'u32[144,128]{1,0:T(1,128)}', space=vmem, size = 0x12000, scoped, tag = 'internal scratch']
  #allocation2 [shape = 'f32[8,8,128]{2,1,0:T(8,128)}', space=vmem, size = 0x8000, scoped, tag = 'scratch operand']
  #allocation3 [shape = 'bf16[8,8,32]{2,1,0:T(8,128)(2,1)}', space=vmem, size = 0x4000, scoped, tag = 'scratch operand']
  %s0 = inlined_call_operand.hbm [shape: bf16[8,8,32], index: 0, kind: input, shape index: {}]
  %s1 = inlined_call_operand.hbm [shape: f32[2,8,32], index: 1, kind: input, shape index: {}]
  %s2 = inlined_call_operand.hbm [shape: f32[2,8,32], index: 2, kind: input, shape index: {}]
  %s3 = inlined_call_operand.hbm [shape: bf16[32,128], index: 3, kind: input, shape index: {}]
  %s4 = inlined_call_operand.hbm [shape: bf16[32,128], index: 4, kind: input, shape index: {}]
  %s5 = inlined_call_operand.vmem [shape: bf16[32,128], index: 5, kind: input, shape index: {}]
  %s6 = inlined_call_operand.hbm [shape: bf16[32,128], index: 6, kind: input, shape index: {}]
  %s7 = inlined_call_operand.vmem [shape: f32[1,128], index: 7, kind: input, shape index: {}]
  %s8 = inlined_call_operand.vmem [shape: f32[1,128], index: 8, kind: input, shape index: {}]
  %s9 = inlined_call_operand.vmem [shape: bf16[32,128], index: 9, kind: input, shape index: {}]
  %s10 = inlined_call_operand.vmem [shape: f32[1,128], index: 10, kind: input, shape index: {}]
  %s11 = inlined_call_operand.hbm [shape: f32[8,128], index: 11, kind: output, shape index: {0}]
  %s12 = inlined_call_operand.hbm [shape: f32[2,8,32], index: 12, kind: output, shape index: {1}]
  %s13 = inlined_call_operand.hbm [shape: f32[2,8,32], index: 13, kind: output, shape index: {2}]
  %14 = xla_tuple %s11, %s12, %s13
  %s15 = sld [smem:[#allocation0]]
  $region94: #{tpu_custom_call.1} parent=0
    _
  %s17 = ssub.s32 1, %s15
  %s18 = scalar_select 0, %s17, %s15
  $region1: #{tpu_custom_call.1} parent=0
    #allocation4 [shape = 'u8[16384]{0}', space=vmem, size = 0x4000, scoped, tag = 'input window, operand 0, single buffered']
    #allocation5 [shape = 's32[1]{0}', space=sflag, size = 0x4, scoped, tag = 'scoped memory for tpu_custom_call.1']
    #allocation6 [shape = 's32[1]{0}', space=sflag, size = 0x4, scoped, tag = 'scoped memory for tpu_custom_call.1']
    #allocation7 [shape = 'u8[8192]{0}', space=vmem, size = 0x2000, scoped, tag = 'input window, operand 1, single buffered']
    #allocation8 [shape = 's32[1]{0}', space=sflag, size = 0x4, scoped, tag = 'scoped memory for tpu_custom_call.1']
    #allocation9 [shape = 'u8[8192]{0}', space=vmem, size = 0x2000, scoped, tag = 'input window, operand 2, single buffered']
    #allocation10 [shape = 'u8[8192]{0}', space=vmem, size = 0x2000, scoped, tag = 'input window, operand 3, single buffered']
    #allocation11 [shape = 's32[1]{0}', space=sflag, size = 0x4, scoped, tag = 'scoped memory for tpu_custom_call.1']
    #allocation12 [shape = 'u8[8192]{0}', space=vmem, size = 0x2000, scoped, tag = 'input window, operand 4, single buffered']
    #allocation13 [shape = 'u8[8192]{0}', space=vmem, size = 0x2000, scoped, tag = 'input window, operand 6, single buffered']
    #allocation14 [shape = 's32[1]{0}', space=sflag, size = 0x4, scoped, tag = 'scoped memory for tpu_custom_call.1']
    #allocation15 [shape = 'u8[4096]{0}', space=vmem, size = 0x1000, scoped, tag = 'output window, operand 0, single buffered']
    #allocation16 [shape = 'u8[8192]{0}', space=vmem, size = 0x2000, scoped, tag = 'output window, operand 1, single buffered']
    #allocation17 [shape = 's32[1]{0}', space=sflag, size = 0x4, scoped, tag = 'scoped memory for tpu_custom_call.1']
    #allocation18 [shape = 'u8[8192]{0}', space=vmem, size = 0x2000, scoped, tag = 'output window, operand 2, single buffered']
    %19 = vsyncpa [#allocation5], 0
    %20 = vsyncpa [#allocation8], 0
    %21 = vsyncpa [#allocation11], 0
    %22 = vsyncpa [#allocation14], 0
    %23 = vsyncpa [#allocation6], 0
    %24 = vsyncpa [#allocation17], 0
    // Predicated region
    $region2: #{tpu_custom_call.1} parent=1 // pred_check
      _
    $region3: #{tpu_custom_call.1} parent=1 // pred_check_branch
      %26 = sbr.rel (0) target = $region5
    $region4: #{tpu_custom_call.1} parent=1 // pred_region
      %s28 = ssub.s32 512, 512
      %29 = vsyncadd [#allocation5], %s28
      %s30 = sshll.u32 [#allocation4], 4
      %s31 = int_to_ptr.vmem [resolvable:$true] %s30
      %36 = dma.hbm_to_vmem [thread:$0]  %s0, 512, %s31, [#allocation5], 64, 64, 4
    $region5: #{tpu_custom_call.1} parent=1 // pred_fallthru
      _
    // Predicated region
    $region6: #{tpu_custom_call.1} parent=1 // pred_check
      _
    $region7: #{tpu_custom_call.1} parent=1 // pred_check_branch
      %38 = sbr.rel (0) target = $region9
    $region8: #{tpu_custom_call.1} parent=1 // pred_region
      %s40 = ssub.s32 256, 256
      %41 = vsyncadd [#allocation8], %s40
      %s42 = sshll.u32 [#allocation7], 4
      %s43 = int_to_ptr.vmem [resolvable:$true] %s42
      %48 = dma.hbm_to_vmem [thread:$0]  %s1, 256, %s43, [#allocation8], 128, 128, 8
    $region9: #{tpu_custom_call.1} parent=1 // pred_fallthru
      _
    // Predicated region
    $region10: #{tpu_custom_call.1} parent=1 // pred_check
      _
    $region11: #{tpu_custom_call.1} parent=1 // pred_check_branch
      %50 = sbr.rel (0) target = $region13
    $region12: #{tpu_custom_call.1} parent=1 // pred_region
      %s52 = ssub.s32 256, 256
      %53 = vsyncadd [#allocation8], %s52
      %s54 = sshll.u32 [#allocation9], 4
      %s55 = int_to_ptr.vmem [resolvable:$true] %s54
      %60 = dma.hbm_to_vmem [thread:$0]  %s2, 256, %s55, [#allocation8], 128, 128, 8
    $region13: #{tpu_custom_call.1} parent=1 // pred_fallthru
      _
    // Predicated region
    $region14: #{tpu_custom_call.1} parent=1 // pred_check
      _
    $region15: #{tpu_custom_call.1} parent=1 // pred_check_branch
      %62 = sbr.rel (0) target = $region17
    $region16: #{tpu_custom_call.1} parent=1 // pred_region
      %s64 = ssub.s32 256, 256
      %65 = vsyncadd [#allocation11], %s64
      %s66 = sshll.u32 [#allocation10], 4
      %s67 = int_to_ptr.vmem [resolvable:$true] %s66
      %72 = dma.hbm_to_vmem [thread:$0]  %s3, 256, %s67, [#allocation11], 64, 64, 4
    $region17: #{tpu_custom_call.1} parent=1 // pred_fallthru
      _
    // Predicated region
    $region18: #{tpu_custom_call.1} parent=1 // pred_check
      _
    $region19: #{tpu_custom_call.1} parent=1 // pred_check_branch
      %74 = sbr.rel (0) target = $region21
    $region20: #{tpu_custom_call.1} parent=1 // pred_region
      %s76 = ssub.s32 256, 256
      %77 = vsyncadd [#allocation11], %s76
      %s78 = sshll.u32 [#allocation12], 4
      %s79 = int_to_ptr.vmem [resolvable:$true] %s78
      %84 = dma.hbm_to_vmem [thread:$0]  %s4, 256, %s79, [#allocation11], 64, 64, 4
    $region21: #{tpu_custom_call.1} parent=1 // pred_fallthru
      _
    // Predicated region
    $region22: #{tpu_custom_call.1} parent=1 // pred_check
      _
    $region23: #{tpu_custom_call.1} parent=1 // pred_check_branch
      %86 = sbr.rel (0) target = $region25
    $region24: #{tpu_custom_call.1} parent=1 // pred_region
      _
    $region25: #{tpu_custom_call.1} parent=1 // pred_fallthru
      _
    // Predicated region
    $region26: #{tpu_custom_call.1} parent=1 // pred_check
      _
    $region27: #{tpu_custom_call.1} parent=1 // pred_check_branch
      %88 = sbr.rel (0) target = $region29
    $region28: #{tpu_custom_call.1} parent=1 // pred_region
      %s90 = ssub.s32 256, 256
      %91 = vsyncadd [#allocation14], %s90
      %s92 = sshll.u32 [#allocation13], 4
      %s93 = int_to_ptr.vmem [resolvable:$true] %s92
      %98 = dma.hbm_to_vmem [thread:$0]  %s6, 256, %s93, [#allocation14], 64, 64, 4
    $region29: #{tpu_custom_call.1} parent=1 // pred_fallthru
      _
    // Predicated region
    $region30: #{tpu_custom_call.1} parent=1 // pred_check
      _
    $region31: #{tpu_custom_call.1} parent=1 // pred_check_branch
      %100 = sbr.rel (0) target = $region33
    $region32: #{tpu_custom_call.1} parent=1 // pred_region
      _
    $region33: #{tpu_custom_call.1} parent=1 // pred_fallthru
      _
    // Predicated region
    $region34: #{tpu_custom_call.1} parent=1 // pred_check
      _
    $region35: #{tpu_custom_call.1} parent=1 // pred_check_branch
      %102 = sbr.rel (0) target = $region37
    $region36: #{tpu_custom_call.1} parent=1 // pred_region
      _
    $region37: #{tpu_custom_call.1} parent=1 // pred_fallthru
      _
    // Predicated region
    $region38: #{tpu_custom_call.1} parent=1 // pred_check
      _
    $region39: #{tpu_custom_call.1} parent=1 // pred_check_branch
      %104 = sbr.rel (0) target = $region41
    $region40: #{tpu_custom_call.1} parent=1 // pred_region
      _
    $region41: #{tpu_custom_call.1} parent=1 // pred_fallthru
      _
    // Predicated region
    $region42: #{tpu_custom_call.1} parent=1 // pred_check
      _
    $region43: #{tpu_custom_call.1} parent=1 // pred_check_branch
      %106 = sbr.rel (0) target = $region45
    $region44: #{tpu_custom_call.1} parent=1 // pred_region
      _
    $region45: #{tpu_custom_call.1} parent=1 // pred_fallthru
      _
    // Predicated region
    $region46: #{tpu_custom_call.1} parent=1 // pred_check
      _
    $region47: #{tpu_custom_call.1} parent=1 // pred_check_branch
      %108 = sbr.rel (0) target = $region49
    $region48: #{tpu_custom_call.1} parent=1 // pred_region
      %109 = dma.done [#allocation5], 512
    $region49: #{tpu_custom_call.1} parent=1 // pred_fallthru
      _
    // Predicated region
    $region50: #{tpu_custom_call.1} parent=1 // pred_check
      _
    $region51: #{tpu_custom_call.1} parent=1 // pred_check_branch
      %111 = sbr.rel (0) target = $region53
    $region52: #{tpu_custom_call.1} parent=1 // pred_region
      %112 = dma.done [#allocation8], 256
    $region53: #{tpu_custom_call.1} parent=1 // pred_fallthru
      _
    // Predicated region
    $region54: #{tpu_custom_call.1} parent=1 // pred_check
      _
    $region55: #{tpu_custom_call.1} parent=1 // pred_check_branch
      %114 = sbr.rel (0) target = $region57
    $region56: #{tpu_custom_call.1} parent=1 // pred_region
      %115 = dma.done [#allocation8], 256
    $region57: #{tpu_custom_call.1} parent=1 // pred_fallthru
      _
    // Predicated region
    $region58: #{tpu_custom_call.1} parent=1 // pred_check
      _
    $region59: #{tpu_custom_call.1} parent=1 // pred_check_branch
      %117 = sbr.rel (0) target = $region61
    $region60: #{tpu_custom_call.1} parent=1 // pred_region
      %118 = dma.done [#allocation11], 256
    $region61: #{tpu_custom_call.1} parent=1 // pred_fallthru
      _
    // Predicated region
    $region62: #{tpu_custom_call.1} parent=1 // pred_check
      _
    $region63: #{tpu_custom_call.1} parent=1 // pred_check_branch
      %120 = sbr.rel (0) target = $region65
    $region64: #{tpu_custom_call.1} parent=1 // pred_region
      %121 = dma.done [#allocation11], 256
    $region65: #{tpu_custom_call.1} parent=1 // pred_fallthru
      _
    // Predicated region
    $region66: #{tpu_custom_call.1} parent=1 // pred_check
      _
    $region67: #{tpu_custom_call.1} parent=1 // pred_check_branch
      %123 = sbr.rel (0) target = $region69
    $region68: #{tpu_custom_call.1} parent=1 // pred_region
      %124 = dma.done [#allocation14], 256
    $region69: #{tpu_custom_call.1} parent=1 // pred_fallthru
      _
    %v126 = vld [vmem:[#allocation4] sm:$0xf]
    %v127 = vld [vmem:[#allocation4 + $0x4] sm:$0xf]
    %v128 = vld [vmem:[#allocation4 + $0x8] sm:$0xf]
    %v129 = vld [vmem:[#allocation4 + $0xc] sm:$0xf]
    %v130 = vld [vmem:[#allocation4 + $0x10] sm:$0xf]
    %v131 = vld [vmem:[#allocation4 + $0x14] sm:$0xf]
    %v132 = vld [vmem:[#allocation4 + $0x18] sm:$0xf]
    %v133 = vld [vmem:[#allocation4 + $0x1c] sm:$0xf]
    %v134 = vld [vmem:[#allocation10] sm:$0xf]
    %v135 = vld [vmem:[#allocation10 + $0x4] sm:$0xf]
    %v136 = vld [vmem:[#allocation10 + $0x8] sm:$0xf]
    %v137 = vld [vmem:[#allocation10 + $0xc] sm:$0xf]
    %v138 = vld [vmem:[%s7] sm:$0x1]
    %v140 = vlaneseq
    %v141 = vshrl.u32 %v140, 7
    %v142 = vsub.s32 0, %v141
    %v143 = vrot.slane %v138, %v142
    %v153 = vunpack.c.l.b16 %v126
    %v154 = vunpack.c.l.b16 %v127
    %v155 = vunpack.c.l.b16 %v128
    %v156 = vunpack.c.l.b16 %v129
    %v157 = vunpack.c.l.b16 %v130
    %v158 = vunpack.c.l.b16 %v131
    %v159 = vunpack.c.l.b16 %v132
    %v160 = vunpack.c.l.b16 %v133
    %v161 = vpack.c.b16 %v154, %v153
    %v162 = vpack.c.b16 %v156, %v155
    %v163 = vpack.c.b16 %v158, %v157
    %v164 = vpack.c.b16 %v160, %v159
    %v169 = vunpack.c.l.b16 %v134
    %v170 = vunpack.c.l.b16 %v135
    %v171 = vunpack.c.l.b16 %v136
    %v172 = vunpack.c.l.b16 %v137
    %v173 = vpack.c.b16 %v170, %v169
    %v174 = vpack.c.b16 %v172, %v171
    %vm177 = vcmask 261120
    %v179 = vsel %vm177, %v161, 0
    %v182 = vsel %vm177, %v162, 0
    %v185 = vsel %vm177, %v163, 0
    %v188 = vsel %vm177, %v164, 0
    %190 = vmatprep.subr.bf16.mxu0 0
    %191 = vmatpush1.bf16.msra.mxu0 %v173
    %192 = vmatprep.subr.bf16.mxu0 0
    %193 = vmatpush1.bf16.msra.mxu0 %v174
    %194 = vmatprep.subr.bf16.mxu0 0
    %195 = vmatpush1.bf16.msra.mxu0 0
    %196 = vmatprep.subr.bf16.mxu0 0
    %197 = vmatpush1.bf16.msra.mxu0 0
    %198 = vmatprep.subr.bf16.mxu0 0
    %199 = vmatpush1.bf16.msra.mxu0 0
    %200 = vmatprep.subr.bf16.mxu0 0
    %201 = vmatpush1.bf16.msra.mxu0 0
    %202 = vmatprep.subr.bf16.mxu0 0
    %203 = vmatpush1.bf16.msra.mxu0 0
    %204 = vmatprep.subr.bf16.mxu0 0
    %205 = vmatpush1.bf16.msra.mxu0 0
    %206 = vmatprep.subr.bf16.mxu0 0
    %207 = vmatpush1.bf16.msra.mxu0 0
    %208 = vmatprep.subr.bf16.mxu0 0
    %209 = vmatpush1.bf16.msra.mxu0 0
    %210 = vmatprep.subr.bf16.mxu0 0
    %211 = vmatpush1.bf16.msra.mxu0 0
    %212 = vmatprep.subr.bf16.mxu0 0
    %213 = vmatpush1.bf16.msra.mxu0 0
    %214 = vmatprep.subr.bf16.mxu0 0
    %215 = vmatpush1.bf16.msra.mxu0 0
    %216 = vmatprep.subr.bf16.mxu0 0
    %217 = vmatpush1.bf16.msra.mxu0 0
    %218 = vmatprep.subr.bf16.mxu0 0
    %219 = vmatpush1.bf16.msra.mxu0 0
    %220 = vmatprep.subr.bf16.mxu0 0
    %221 = vmatpush1.bf16.msra.mxu0 0
    %222 = vmatprep.mubr.bf16.mxu0 0
    %223 = vmatmul.mubr.bf16.gmra.mrb[0].mxu0 %v179
    %v224 = vpop.f32.mrb[0].mxu0
    %v225 = vadd.f32 %v143, %v224
    %v226 = vpop.f32.mrb[0].mxu0
    %v227 = vpop.f32.mrb[0].mxu0
    %v228 = vadd.f32 %v143, %v227
    %v229 = vpop.f32.mrb[0].mxu0
    %230 = vmatprep.mubr.bf16.mxu0 0
    %231 = vmatmul.mubr.bf16.gmra.mrb[0].mxu0 %v182
    %v232 = vpop.f32.mrb[0].mxu0
    %v233 = vadd.f32 %v143, %v232
    %v234 = vpop.f32.mrb[0].mxu0
    %v235 = vpop.f32.mrb[0].mxu0
    %v236 = vadd.f32 %v143, %v235
    %v237 = vpop.f32.mrb[0].mxu0
    %238 = vmatprep.mubr.bf16.mxu0 0
    %239 = vmatmul.mubr.bf16.gmra.mrb[0].mxu0 %v185
    %v240 = vpop.f32.mrb[0].mxu0
    %v241 = vadd.f32 %v143, %v240
    %v242 = vpop.f32.mrb[0].mxu0
    %v243 = vpop.f32.mrb[0].mxu0
    %v244 = vadd.f32 %v143, %v243
    %v245 = vpop.f32.mrb[0].mxu0
    %246 = vmatprep.mubr.bf16.mxu0 0
    %247 = vmatmul.mubr.bf16.gmra.mrb[0].mxu0 %v188
    %v248 = vpop.f32.mrb[0].mxu0
    %v249 = vadd.f32 %v143, %v248
    %v250 = vpop.f32.mrb[0].mxu0
    %v251 = vpop.f32.mrb[0].mxu0
    %v252 = vadd.f32 %v143, %v251
    %v253 = vpop.f32.mrb[0].mxu0
    %254 = vdwg.mxu0
    %255 = vst [vmem:[#allocation2] sm:$0xff] %v225
    %256 = vst [vmem:[#allocation2 + $0x8] sm:$0xff] %v228
    %257 = vst [vmem:[#allocation2 + $0x10] sm:$0xff] %v233
    %258 = vst [vmem:[#allocation2 + $0x18] sm:$0xff] %v236
    %259 = vst [vmem:[#allocation2 + $0x20] sm:$0xff] %v241
    %260 = vst [vmem:[#allocation2 + $0x28] sm:$0xff] %v244
    %261 = vst [vmem:[#allocation2 + $0x30] sm:$0xff] %v249
    %262 = vst [vmem:[#allocation2 + $0x38] sm:$0xff] %v252
    %v263 = vld [vmem:[%s5] sm:$0xf]
    %v264 = vld [vmem:[%s5 + $0x4] sm:$0xf]
    %v265 = vld [vmem:[%s5 + $0x8] sm:$0xf]
    %v266 = vld [vmem:[%s5 + $0xc] sm:$0xf]
    %v267 = vld [vmem:[#allocation7] sm:$0xff]
    %v268 = vld [vmem:[#allocation9] sm:$0xff]
    %v269 = vld [vmem:[#allocation2] sm:$0xff]
    %v270 = vpack.c.bf16 %v267, %v267
    %v275 = vunpack.c.l.b16 %v263
    %v276 = vunpack.c.l.b16 %v264
    %v277 = vunpack.c.l.b16 %v265
    %v278 = vunpack.c.l.b16 %v266
    %v279 = vpack.c.b16 %v276, %v275
    %v280 = vpack.c.b16 %v278, %v277
    %v284 = vsel %vm177, %v270, 0
    %286 = vmatprep.subr.bf16.mxu0 0
    %287 = vmatpush1.bf16.msra.mxu0 %v279
    %288 = vmatprep.subr.bf16.mxu0 0
    %289 = vmatpush1.bf16.msra.mxu0 %v280
    %290 = vmatprep.subr.bf16.mxu0 0
    %291 = vmatpush1.bf16.msra.mxu0 0
    %292 = vmatprep.subr.bf16.mxu0 0
    %293 = vmatpush1.bf16.msra.mxu0 0
    %294 = vmatprep.subr.bf16.mxu0 0
    %295 = vmatpush1.bf16.msra.mxu0 0
    %296 = vmatprep.subr.bf16.mxu0 0
    %297 = vmatpush1.bf16.msra.mxu0 0
    %298 = vmatprep.subr.bf16.mxu0 0
    %299 = vmatpush1.bf16.msra.mxu0 0
    %300 = vmatprep.subr.bf16.mxu0 0
    %301 = vmatpush1.bf16.msra.mxu0 0
    %302 = vmatprep.subr.bf16.mxu0 0
    %303 = vmatpush1.bf16.msra.mxu0 0
    %304 = vmatprep.subr.bf16.mxu0 0
    %305 = vmatpush1.bf16.msra.mxu0 0
    %306 = vmatprep.subr.bf16.mxu0 0
    %307 = vmatpush1.bf16.msra.mxu0 0
    %308 = vmatprep.subr.bf16.mxu0 0
    %309 = vmatpush1.bf16.msra.mxu0 0
    %310 = vmatprep.subr.bf16.mxu0 0
    %311 = vmatpush1.bf16.msra.mxu0 0
    %312 = vmatprep.subr.bf16.mxu0 0
    %313 = vmatpush1.bf16.msra.mxu0 0
    %314 = vmatprep.subr.bf16.mxu0 0
    %315 = vmatpush1.bf16.msra.mxu0 0
    %316 = vmatprep.subr.bf16.mxu0 0
    %317 = vmatpush1.bf16.msra.mxu0 0
    %318 = vmatprep.mubr.bf16.mxu0 0
    %319 = vmatmul.mubr.bf16.gmra.mrb[0].mxu0 %v284
    %v320 = vpop.f32.mrb[0].mxu0
    %v321 = vadd.f32 0.0, %v320
    %v322 = vpop.f32.mrb[0].mxu0
    %v323 = vpop.f32.mrb[0].mxu0
    %v324 = vpop.f32.mrb[0].mxu0
    %325 = vdwg.mxu0
    %v326 = vadd.f32 %v269, %v321
    %v327 = vxor.u32 %v326, 2147483648
    %v328 = vmul.f32 %v327, 1.442695
    %v329 = vpow.pop %v328
    %v330 = vadd.f32 %v329, 1.0
    %v331 = vrcp.pop %v330
    %v332 = vmul.f32 1.0, %v331
    %v333 = vtanh.pop %v326
    %335 = vrot.lane.b32.xlu0 %v268, 32
    %v336 = vpop.permute.xlu0 %335
    %v338 = vmul.f32 %v332, %v336
    %340 = vrot.lane.b32.xlu0 %v333, 32
    %v341 = vpop.permute.xlu0 %340
    %v343 = vmul.f32 %v332, %v341
    %345 = vrot.lane.b32.xlu0 %v343, 32
    %v346 = vpop.permute.xlu0 %345
    %v348 = vadd.f32 %v338, %v346
    %v349 = vtanh.pop %v348
    %351 = vrot.lane.b32.xlu0 %v349, 32
    %v352 = vpop.permute.xlu0 %351
    %v354 = vmul.f32 %v332, %v352
    %v355 = vpack.c.bf16 %v354, %v354
    %v357 = vunpack.c.l.b16 %v355
    %v358 = vpack.c.b16 %v357, %v357
    %359 = vrot.lane.b32.xlu0 %v358, 64
    %v360 = vpop.permute.xlu0 %359
    %vm362 = vcmask 257024
    %363 = vst.msk [vmem:[#allocation3] sm:$0xf] %vm362, %v360
    %s364 = scalar_lea.vmem [#allocation2], 8
    %v365 = vld [vmem:[%s364] sm:$0xff]
    %366 = vrot.lane.b32.xlu0 %v355, 64
    %v367 = vpop.permute.xlu0 %366
    %v369 = vsel %vm177, %v367, 0
    %371 = vmatprep.subr.bf16.mxu0 0
    %372 = vmatpush1.bf16.msra.mxu0 %v279
    %373 = vmatprep.subr.bf16.mxu0 0
    %374 = vmatpush1.bf16.msra.mxu0 %v280
    %375 = vmatprep.subr.bf16.mxu0 0
    %376 = vmatpush1.bf16.msra.mxu0 0
    %377 = vmatprep.subr.bf16.mxu0 0
    %378 = vmatpush1.bf16.msra.mxu0 0
    %379 = vmatprep.subr.bf16.mxu0 0
    %380 = vmatpush1.bf16.msra.mxu0 0
    %381 = vmatprep.subr.bf16.mxu0 0
    %382 = vmatpush1.bf16.msra.mxu0 0
    %383 = vmatprep.subr.bf16.mxu0 0
    %384 = vmatpush1.bf16.msra.mxu0 0
    %385 = vmatprep.subr.bf16.mxu0 0
    %386 = vmatpush1.bf16.msra.mxu0 0
    %387 = vmatprep.subr.bf16.mxu0 0
    %388 = vmatpush1.bf16.msra.mxu0 0
    %389 = vmatprep.subr.bf16.mxu0 0
    %390 = vmatpush1.bf16.msra.mxu0 0
    %391 = vmatprep.subr.bf16.mxu0 0
    %392 = vmatpush1.bf16.msra.mxu0 0
    %393 = vmatprep.subr.bf16.mxu0 0
    %394 = vmatpush1.bf16.msra.mxu0 0
    %395 = vmatprep.subr.bf16.mxu0 0
    %396 = vmatpush1.bf16.msra.mxu0 0
    %397 = vmatprep.subr.bf16.mxu0 0
    %398 = vmatpush1.bf16.msra.mxu0 0
    %399 = vmatprep.subr.bf16.mxu0 0
    %400 = vmatpush1.bf16.msra.mxu0 0
    %401 = vmatprep.subr.bf16.mxu0 0
    %402 = vmatpush1.bf16.msra.mxu0 0
    %403 = vmatprep.mubr.bf16.mxu0 0
    %404 = vmatmul.mubr.bf16.gmra.mrb[0].mxu0 %v369
    %v405 = vpop.f32.mrb[0].mxu0
    %v406 = vadd.f32 0.0, %v405
    %v407 = vpop.f32.mrb[0].mxu0
    %v408 = vpop.f32.mrb[0].mxu0
    %v409 = vpop.f32.mrb[0].mxu0
    %410 = vdwg.mxu0
    %v411 = vadd.f32 %v365, %v406
    %v412 = vxor.u32 %v411, 2147483648
    %v413 = vmul.f32 %v412, 1.442695
    %v414 = vpow.pop %v413
    %v415 = vadd.f32 %v414, 1.0
    %v416 = vrcp.pop %v415
    %v417 = vmul.f32 1.0, %v416
    %v418 = vtanh.pop %v411
    %v419 = vmul.f32 %v417, %v348
    %421 = vrot.lane.b32.xlu0 %v418, 32
    %v422 = vpop.permute.xlu0 %421
    %v424 = vmul.f32 %v417, %v422
    %426 = vrot.lane.b32.xlu0 %v424, 32
    %v427 = vpop.permute.xlu0 %426
    %v429 = vadd.f32 %v419, %v427
    %v430 = vtanh.pop %v429
    %432 = vrot.lane.b32.xlu0 %v430, 32
    %v433 = vpop.permute.xlu0 %432
    %v435 = vmul.f32 %v417, %v433
    %v436 = vpack.c.bf16 %v435, %v435
    %v438 = vunpack.c.l.b16 %v436
    %v439 = vpack.c.b16 %v438, %v438
    %440 = vrot.lane.b32.xlu0 %v439, 64
    %v441 = vpop.permute.xlu0 %440
    %s443 = scalar_lea.vmem [#allocation3], 4
    %444 = vst.msk [vmem:[%s443] sm:$0xf] %vm362, %v441
    %s445 = scalar_lea.vmem [#allocation2], 16
    %v446 = vld [vmem:[%s445] sm:$0xff]
    %447 = vrot.lane.b32.xlu0 %v436, 64
    %v448 = vpop.permute.xlu0 %447
    %v450 = vsel %vm177, %v448, 0
    %452 = vmatprep.subr.bf16.mxu0 0
    %453 = vmatpush1.bf16.msra.mxu0 %v279
    %454 = vmatprep.subr.bf16.mxu0 0
    %455 = vmatpush1.bf16.msra.mxu0 %v280
    %456 = vmatprep.subr.bf16.mxu0 0
    %457 = vmatpush1.bf16.msra.mxu0 0
    %458 = vmatprep.subr.bf16.mxu0 0
    %459 = vmatpush1.bf16.msra.mxu0 0
    %460 = vmatprep.subr.bf16.mxu0 0
    %461 = vmatpush1.bf16.msra.mxu0 0
    %462 = vmatprep.subr.bf16.mxu0 0
    %463 = vmatpush1.bf16.msra.mxu0 0
    %464 = vmatprep.subr.bf16.mxu0 0
    %465 = vmatpush1.bf16.msra.mxu0 0
    %466 = vmatprep.subr.bf16.mxu0 0
    %467 = vmatpush1.bf16.msra.mxu0 0
    %468 = vmatprep.subr.bf16.mxu0 0
    %469 = vmatpush1.bf16.msra.mxu0 0
    %470 = vmatprep.subr.bf16.mxu0 0
    %471 = vmatpush1.bf16.msra.mxu0 0
    %472 = vmatprep.subr.bf16.mxu0 0
    %473 = vmatpush1.bf16.msra.mxu0 0
    %474 = vmatprep.subr.bf16.mxu0 0
    %475 = vmatpush1.bf16.msra.mxu0 0
    %476 = vmatprep.subr.bf16.mxu0 0
    %477 = vmatpush1.bf16.msra.mxu0 0
    %478 = vmatprep.subr.bf16.mxu0 0
    %479 = vmatpush1.bf16.msra.mxu0 0
    %480 = vmatprep.subr.bf16.mxu0 0
    %481 = vmatpush1.bf16.msra.mxu0 0
    %482 = vmatprep.subr.bf16.mxu0 0
    %483 = vmatpush1.bf16.msra.mxu0 0
    %484 = vmatprep.mubr.bf16.mxu0 0
    %485 = vmatmul.mubr.bf16.gmra.mrb[0].mxu0 %v450
    %v486 = vpop.f32.mrb[0].mxu0
    %v487 = vadd.f32 0.0, %v486
    %v488 = vpop.f32.mrb[0].mxu0
    %v489 = vpop.f32.mrb[0].mxu0
    %v490 = vpop.f32.mrb[0].mxu0
    %491 = vdwg.mxu0
    %v492 = vadd.f32 %v446, %v487
    %v493 = vxor.u32 %v492, 2147483648
    %v494 = vmul.f32 %v493, 1.442695
    %v495 = vpow.pop %v494
    %v496 = vadd.f32 %v495, 1.0
    %v497 = vrcp.pop %v496
    %v498 = vmul.f32 1.0, %v497
    %v499 = vtanh.pop %v492
    %v500 = vmul.f32 %v498, %v429
    %502 = vrot.lane.b32.xlu0 %v499, 32
    %v503 = vpop.permute.xlu0 %502
    %v505 = vmul.f32 %v498, %v503
    %507 = vrot.lane.b32.xlu0 %v505, 32
    %v508 = vpop.permute.xlu0 %507
    %v510 = vadd.f32 %v500, %v508
    %v511 = vtanh.pop %v510
    %513 = vrot.lane.b32.xlu0 %v511, 32
    %v514 = vpop.permute.xlu0 %513
    %v516 = vmul.f32 %v498, %v514
    %v517 = vpack.c.bf16 %v516, %v516
    %v519 = vunpack.c.l.b16 %v517
    %v520 = vpack.c.b16 %v519, %v519
    %521 = vrot.lane.b32.xlu0 %v520, 64
    %v522 = vpop.permute.xlu0 %521
    %s524 = scalar_lea.vmem [#allocation3], 8
    %525 = vst.msk [vmem:[%s524] sm:$0xf] %vm362, %v522
    %s526 = scalar_lea.vmem [#allocation2], 24
    %v527 = vld [vmem:[%s526] sm:$0xff]
    %528 = vrot.lane.b32.xlu0 %v517, 64
    %v529 = vpop.permute.xlu0 %528
    %v531 = vsel %vm177, %v529, 0
    %533 = vmatprep.subr.bf16.mxu0 0
    %534 = vmatpush1.bf16.msra.mxu0 %v279
    %535 = vmatprep.subr.bf16.mxu0 0
    %536 = vmatpush1.bf16.msra.mxu0 %v280
    %537 = vmatprep.subr.bf16.mxu0 0
    %538 = vmatpush1.bf16.msra.mxu0 0
    %539 = vmatprep.subr.bf16.mxu0 0
    %540 = vmatpush1.bf16.msra.mxu0 0
    %541 = vmatprep.subr.bf16.mxu0 0
    %542 = vmatpush1.bf16.msra.mxu0 0
    %543 = vmatprep.subr.bf16.mxu0 0
    %544 = vmatpush1.bf16.msra.mxu0 0
    %545 = vmatprep.subr.bf16.mxu0 0
    %546 = vmatpush1.bf16.msra.mxu0 0
    %547 = vmatprep.subr.bf16.mxu0 0
    %548 = vmatpush1.bf16.msra.mxu0 0
    %549 = vmatprep.subr.bf16.mxu0 0
    %550 = vmatpush1.bf16.msra.mxu0 0
    %551 = vmatprep.subr.bf16.mxu0 0
    %552 = vmatpush1.bf16.msra.mxu0 0
    %553 = vmatprep.subr.bf16.mxu0 0
    %554 = vmatpush1.bf16.msra.mxu0 0
    %555 = vmatprep.subr.bf16.mxu0 0
    %556 = vmatpush1.bf16.msra.mxu0 0
    %557 = vmatprep.subr.bf16.mxu0 0
    %558 = vmatpush1.bf16.msra.mxu0 0
    %559 = vmatprep.subr.bf16.mxu0 0
    %560 = vmatpush1.bf16.msra.mxu0 0
    %561 = vmatprep.subr.bf16.mxu0 0
    %562 = vmatpush1.bf16.msra.mxu0 0
    %563 = vmatprep.subr.bf16.mxu0 0
    %564 = vmatpush1.bf16.msra.mxu0 0
    %565 = vmatprep.mubr.bf16.mxu0 0
    %566 = vmatmul.mubr.bf16.gmra.mrb[0].mxu0 %v531
    %v567 = vpop.f32.mrb[0].mxu0
    %v568 = vadd.f32 0.0, %v567
    %v569 = vpop.f32.mrb[0].mxu0
    %v570 = vpop.f32.mrb[0].mxu0
    %v571 = vpop.f32.mrb[0].mxu0
    %572 = vdwg.mxu0
    %v573 = vadd.f32 %v527, %v568
    %v574 = vxor.u32 %v573, 2147483648
    %v575 = vmul.f32 %v574, 1.442695
    %v576 = vpow.pop %v575
    %v577 = vadd.f32 %v576, 1.0
    %v578 = vrcp.pop %v577
    %v579 = vmul.f32 1.0, %v578
    %v580 = vtanh.pop %v573
    %v581 = vmul.f32 %v579, %v510
    %583 = vrot.lane.b32.xlu0 %v580, 32
    %v584 = vpop.permute.xlu0 %583
    %v586 = vmul.f32 %v579, %v584
    %588 = vrot.lane.b32.xlu0 %v586, 32
    %v589 = vpop.permute.xlu0 %588
    %v591 = vadd.f32 %v581, %v589
    %v592 = vtanh.pop %v591
    %594 = vrot.lane.b32.xlu0 %v592, 32
    %v595 = vpop.permute.xlu0 %594
    %v597 = vmul.f32 %v579, %v595
    %v598 = vpack.c.bf16 %v597, %v597
    %v600 = vunpack.c.l.b16 %v598
    %v601 = vpack.c.b16 %v600, %v600
    %602 = vrot.lane.b32.xlu0 %v601, 64
    %v603 = vpop.permute.xlu0 %602
    %s605 = scalar_lea.vmem [#allocation3], 12
    %606 = vst.msk [vmem:[%s605] sm:$0xf] %vm362, %v603
    %s607 = scalar_lea.vmem [#allocation2], 32
    %v608 = vld [vmem:[%s607] sm:$0xff]
    %609 = vrot.lane.b32.xlu0 %v598, 64
    %v610 = vpop.permute.xlu0 %609
    %v612 = vsel %vm177, %v610, 0
    %614 = vmatprep.subr.bf16.mxu0 0
    %615 = vmatpush1.bf16.msra.mxu0 %v279
    %616 = vmatprep.subr.bf16.mxu0 0
    %617 = vmatpush1.bf16.msra.mxu0 %v280
    %618 = vmatprep.subr.bf16.mxu0 0
    %619 = vmatpush1.bf16.msra.mxu0 0
    %620 = vmatprep.subr.bf16.mxu0 0
    %621 = vmatpush1.bf16.msra.mxu0 0
    %622 = vmatprep.subr.bf16.mxu0 0
    %623 = vmatpush1.bf16.msra.mxu0 0
    %624 = vmatprep.subr.bf16.mxu0 0
    %625 = vmatpush1.bf16.msra.mxu0 0
    %626 = vmatprep.subr.bf16.mxu0 0
    %627 = vmatpush1.bf16.msra.mxu0 0
    %628 = vmatprep.subr.bf16.mxu0 0
    %629 = vmatpush1.bf16.msra.mxu0 0
    %630 = vmatprep.subr.bf16.mxu0 0
    %631 = vmatpush1.bf16.msra.mxu0 0
    %632 = vmatprep.subr.bf16.mxu0 0
    %633 = vmatpush1.bf16.msra.mxu0 0
    %634 = vmatprep.subr.bf16.mxu0 0
    %635 = vmatpush1.bf16.msra.mxu0 0
    %636 = vmatprep.subr.bf16.mxu0 0
    %637 = vmatpush1.bf16.msra.mxu0 0
    %638 = vmatprep.subr.bf16.mxu0 0
    %639 = vmatpush1.bf16.msra.mxu0 0
    %640 = vmatprep.subr.bf16.mxu0 0
    %641 = vmatpush1.bf16.msra.mxu0 0
    %642 = vmatprep.subr.bf16.mxu0 0
    %643 = vmatpush1.bf16.msra.mxu0 0
    %644 = vmatprep.subr.bf16.mxu0 0
    %645 = vmatpush1.bf16.msra.mxu0 0
    %646 = vmatprep.mubr.bf16.mxu0 0
    %647 = vmatmul.mubr.bf16.gmra.mrb[0].mxu0 %v612
    %v648 = vpop.f32.mrb[0].mxu0
    %v649 = vadd.f32 0.0, %v648
    %v650 = vpop.f32.mrb[0].mxu0
    %v651 = vpop.f32.mrb[0].mxu0
    %v652 = vpop.f32.mrb[0].mxu0
    %653 = vdwg.mxu0
    %v654 = vadd.f32 %v608, %v649
    %v655 = vxor.u32 %v654, 2147483648
    %v656 = vmul.f32 %v655, 1.442695
    %v657 = vpow.pop %v656
    %v658 = vadd.f32 %v657, 1.0
    %v659 = vrcp.pop %v658
    %v660 = vmul.f32 1.0, %v659
    %v661 = vtanh.pop %v654
    %v662 = vmul.f32 %v660, %v591
    %664 = vrot.lane.b32.xlu0 %v661, 32
    %v665 = vpop.permute.xlu0 %664
    %v667 = vmul.f32 %v660, %v665
    %669 = vrot.lane.b32.xlu0 %v667, 32
    %v670 = vpop.permute.xlu0 %669
    %v672 = vadd.f32 %v662, %v670
    %v673 = vtanh.pop %v672
    %675 = vrot.lane.b32.xlu0 %v673, 32
    %v676 = vpop.permute.xlu0 %675
    %v678 = vmul.f32 %v660, %v676
    %v679 = vpack.c.bf16 %v678, %v678
    %v681 = vunpack.c.l.b16 %v679
    %v682 = vpack.c.b16 %v681, %v681
    %683 = vrot.lane.b32.xlu0 %v682, 64
    %v684 = vpop.permute.xlu0 %683
    %s686 = scalar_lea.vmem [#allocation3], 16
    %687 = vst.msk [vmem:[%s686] sm:$0xf] %vm362, %v684
    %s688 = scalar_lea.vmem [#allocation2], 40
    %v689 = vld [vmem:[%s688] sm:$0xff]
    %690 = vrot.lane.b32.xlu0 %v679, 64
    %v691 = vpop.permute.xlu0 %690
    %v693 = vsel %vm177, %v691, 0
    %695 = vmatprep.subr.bf16.mxu0 0
    %696 = vmatpush1.bf16.msra.mxu0 %v279
    %697 = vmatprep.subr.bf16.mxu0 0
    %698 = vmatpush1.bf16.msra.mxu0 %v280
    %699 = vmatprep.subr.bf16.mxu0 0
    %700 = vmatpush1.bf16.msra.mxu0 0
    %701 = vmatprep.subr.bf16.mxu0 0
    %702 = vmatpush1.bf16.msra.mxu0 0
    %703 = vmatprep.subr.bf16.mxu0 0
    %704 = vmatpush1.bf16.msra.mxu0 0
    %705 = vmatprep.subr.bf16.mxu0 0
    %706 = vmatpush1.bf16.msra.mxu0 0
    %707 = vmatprep.subr.bf16.mxu0 0
    %708 = vmatpush1.bf16.msra.mxu0 0
    %709 = vmatprep.subr.bf16.mxu0 0
    %710 = vmatpush1.bf16.msra.mxu0 0
    %711 = vmatprep.subr.bf16.mxu0 0
    %712 = vmatpush1.bf16.msra.mxu0 0
    %713 = vmatprep.subr.bf16.mxu0 0
    %714 = vmatpush1.bf16.msra.mxu0 0
    %715 = vmatprep.subr.bf16.mxu0 0
    %716 = vmatpush1.bf16.msra.mxu0 0
    %717 = vmatprep.subr.bf16.mxu0 0
    %718 = vmatpush1.bf16.msra.mxu0 0
    %719 = vmatprep.subr.bf16.mxu0 0
    %720 = vmatpush1.bf16.msra.mxu0 0
    %721 = vmatprep.subr.bf16.mxu0 0
    %722 = vmatpush1.bf16.msra.mxu0 0
    %723 = vmatprep.subr.bf16.mxu0 0
    %724 = vmatpush1.bf16.msra.mxu0 0
    %725 = vmatprep.subr.bf16.mxu0 0
    %726 = vmatpush1.bf16.msra.mxu0 0
    %727 = vmatprep.mubr.bf16.mxu0 0
    %728 = vmatmul.mubr.bf16.gmra.mrb[0].mxu0 %v693
    %v729 = vpop.f32.mrb[0].mxu0
    %v730 = vadd.f32 0.0, %v729
    %v731 = vpop.f32.mrb[0].mxu0
    %v732 = vpop.f32.mrb[0].mxu0
    %v733 = vpop.f32.mrb[0].mxu0
    %734 = vdwg.mxu0
    %v735 = vadd.f32 %v689, %v730
    %v736 = vxor.u32 %v735, 2147483648
    %v737 = vmul.f32 %v736, 1.442695
    %v738 = vpow.pop %v737
    %v739 = vadd.f32 %v738, 1.0
    %v740 = vrcp.pop %v739
    %v741 = vmul.f32 1.0, %v740
    %v742 = vtanh.pop %v735
    %v743 = vmul.f32 %v741, %v672
    %745 = vrot.lane.b32.xlu0 %v742, 32
    %v746 = vpop.permute.xlu0 %745
    %v748 = vmul.f32 %v741, %v746
    %750 = vrot.lane.b32.xlu0 %v748, 32
    %v751 = vpop.permute.xlu0 %750
    %v753 = vadd.f32 %v743, %v751
    %v754 = vtanh.pop %v753
    %756 = vrot.lane.b32.xlu0 %v754, 32
    %v757 = vpop.permute.xlu0 %756
    %v759 = vmul.f32 %v741, %v757
    %v760 = vpack.c.bf16 %v759, %v759
    %v762 = vunpack.c.l.b16 %v760
    %v763 = vpack.c.b16 %v762, %v762
    %764 = vrot.lane.b32.xlu0 %v763, 64
    %v765 = vpop.permute.xlu0 %764
    %s767 = scalar_lea.vmem [#allocation3], 20
    %768 = vst.msk [vmem:[%s767] sm:$0xf] %vm362, %v765
    %s769 = scalar_lea.vmem [#allocation2], 48
    %v770 = vld [vmem:[%s769] sm:$0xff]
    %771 = vrot.lane.b32.xlu0 %v760, 64
    %v772 = vpop.permute.xlu0 %771
    %v774 = vsel %vm177, %v772, 0
    %776 = vmatprep.subr.bf16.mxu0 0
    %777 = vmatpush1.bf16.msra.mxu0 %v279
    %778 = vmatprep.subr.bf16.mxu0 0
    %779 = vmatpush1.bf16.msra.mxu0 %v280
    %780 = vmatprep.subr.bf16.mxu0 0
    %781 = vmatpush1.bf16.msra.mxu0 0
    %782 = vmatprep.subr.bf16.mxu0 0
    %783 = vmatpush1.bf16.msra.mxu0 0
    %784 = vmatprep.subr.bf16.mxu0 0
    %785 = vmatpush1.bf16.msra.mxu0 0
    %786 = vmatprep.subr.bf16.mxu0 0
    %787 = vmatpush1.bf16.msra.mxu0 0
    %788 = vmatprep.subr.bf16.mxu0 0
    %789 = vmatpush1.bf16.msra.mxu0 0
    %790 = vmatprep.subr.bf16.mxu0 0
    %791 = vmatpush1.bf16.msra.mxu0 0
    %792 = vmatprep.subr.bf16.mxu0 0
    %793 = vmatpush1.bf16.msra.mxu0 0
    %794 = vmatprep.subr.bf16.mxu0 0
    %795 = vmatpush1.bf16.msra.mxu0 0
    %796 = vmatprep.subr.bf16.mxu0 0
    %797 = vmatpush1.bf16.msra.mxu0 0
    %798 = vmatprep.subr.bf16.mxu0 0
    %799 = vmatpush1.bf16.msra.mxu0 0
    %800 = vmatprep.subr.bf16.mxu0 0
    %801 = vmatpush1.bf16.msra.mxu0 0
    %802 = vmatprep.subr.bf16.mxu0 0
    %803 = vmatpush1.bf16.msra.mxu0 0
    %804 = vmatprep.subr.bf16.mxu0 0
    %805 = vmatpush1.bf16.msra.mxu0 0
    %806 = vmatprep.subr.bf16.mxu0 0
    %807 = vmatpush1.bf16.msra.mxu0 0
    %808 = vmatprep.mubr.bf16.mxu0 0
    %809 = vmatmul.mubr.bf16.gmra.mrb[0].mxu0 %v774
    %v810 = vpop.f32.mrb[0].mxu0
    %v811 = vadd.f32 0.0, %v810
    %v812 = vpop.f32.mrb[0].mxu0
    %v813 = vpop.f32.mrb[0].mxu0
    %v814 = vpop.f32.mrb[0].mxu0
    %815 = vdwg.mxu0
    %v816 = vadd.f32 %v770, %v811
    %v817 = vxor.u32 %v816, 2147483648
    %v818 = vmul.f32 %v817, 1.442695
    %v819 = vpow.pop %v818
    %v820 = vadd.f32 %v819, 1.0
    %v821 = vrcp.pop %v820
    %v822 = vmul.f32 1.0, %v821
    %v823 = vtanh.pop %v816
    %v824 = vmul.f32 %v822, %v753
    %826 = vrot.lane.b32.xlu0 %v823, 32
    %v827 = vpop.permute.xlu0 %826
    %v829 = vmul.f32 %v822, %v827
    %831 = vrot.lane.b32.xlu0 %v829, 32
    %v832 = vpop.permute.xlu0 %831
    %v834 = vadd.f32 %v824, %v832
    %v835 = vtanh.pop %v834
    %837 = vrot.lane.b32.xlu0 %v835, 32
    %v838 = vpop.permute.xlu0 %837
    %v840 = vmul.f32 %v822, %v838
    %v841 = vpack.c.bf16 %v840, %v840
    %v843 = vunpack.c.l.b16 %v841
    %v844 = vpack.c.b16 %v843, %v843
    %845 = vrot.lane.b32.xlu0 %v844, 64
    %v846 = vpop.permute.xlu0 %845
    %s848 = scalar_lea.vmem [#allocation3], 24
    %849 = vst.msk [vmem:[%s848] sm:$0xf] %vm362, %v846
    %s850 = scalar_lea.vmem [#allocation2], 56
    %v851 = vld [vmem:[%s850] sm:$0xff]
    %852 = vrot.lane.b32.xlu0 %v841, 64
    %v853 = vpop.permute.xlu0 %852
    %v855 = vsel %vm177, %v853, 0
    %857 = vmatprep.subr.bf16.mxu0 0
    %858 = vmatpush1.bf16.msra.mxu0 %v279
    %859 = vmatprep.subr.bf16.mxu0 0
    %860 = vmatpush1.bf16.msra.mxu0 %v280
    %861 = vmatprep.subr.bf16.mxu0 0
    %862 = vmatpush1.bf16.msra.mxu0 0
    %863 = vmatprep.subr.bf16.mxu0 0
    %864 = vmatpush1.bf16.msra.mxu0 0
    %865 = vmatprep.subr.bf16.mxu0 0
    %866 = vmatpush1.bf16.msra.mxu0 0
    %867 = vmatprep.subr.bf16.mxu0 0
    %868 = vmatpush1.bf16.msra.mxu0 0
    %869 = vmatprep.subr.bf16.mxu0 0
    %870 = vmatpush1.bf16.msra.mxu0 0
    %871 = vmatprep.subr.bf16.mxu0 0
    %872 = vmatpush1.bf16.msra.mxu0 0
    %873 = vmatprep.subr.bf16.mxu0 0
    %874 = vmatpush1.bf16.msra.mxu0 0
    %875 = vmatprep.subr.bf16.mxu0 0
    %876 = vmatpush1.bf16.msra.mxu0 0
    %877 = vmatprep.subr.bf16.mxu0 0
    %878 = vmatpush1.bf16.msra.mxu0 0
    %879 = vmatprep.subr.bf16.mxu0 0
    %880 = vmatpush1.bf16.msra.mxu0 0
    %881 = vmatprep.subr.bf16.mxu0 0
    %882 = vmatpush1.bf16.msra.mxu0 0
    %883 = vmatprep.subr.bf16.mxu0 0
    %884 = vmatpush1.bf16.msra.mxu0 0
    %885 = vmatprep.subr.bf16.mxu0 0
    %886 = vmatpush1.bf16.msra.mxu0 0
    %887 = vmatprep.subr.bf16.mxu0 0
    %888 = vmatpush1.bf16.msra.mxu0 0
    %889 = vmatprep.mubr.bf16.mxu0 0
    %890 = vmatmul.mubr.bf16.gmra.mrb[0].mxu0 %v855
    %v891 = vpop.f32.mrb[0].mxu0
    %v892 = vadd.f32 0.0, %v891
    %v893 = vpop.f32.mrb[0].mxu0
    %v894 = vpop.f32.mrb[0].mxu0
    %v895 = vpop.f32.mrb[0].mxu0
    %896 = vdwg.mxu0
    %v897 = vadd.f32 %v851, %v892
    %v898 = vxor.u32 %v897, 2147483648
    %v899 = vmul.f32 %v898, 1.442695
    %v900 = vpow.pop %v899
    %v901 = vadd.f32 %v900, 1.0
    %v902 = vrcp.pop %v901
    %v903 = vmul.f32 1.0, %v902
    %v904 = vtanh.pop %v897
    %v905 = vmul.f32 %v903, %v834
    %907 = vrot.lane.b32.xlu0 %v904, 32
    %v908 = vpop.permute.xlu0 %907
    %v910 = vmul.f32 %v903, %v908
    %912 = vrot.lane.b32.xlu0 %v910, 32
    %v913 = vpop.permute.xlu0 %912
    %v915 = vadd.f32 %v905, %v913
    %v916 = vtanh.pop %v915
    %918 = vrot.lane.b32.xlu0 %v916, 32
    %v919 = vpop.permute.xlu0 %918
    %v921 = vmul.f32 %v903, %v919
    %v922 = vpack.c.bf16 %v921, %v921
    %v924 = vunpack.c.l.b16 %v922
    %v925 = vpack.c.b16 %v924, %v924
    %926 = vrot.lane.b32.xlu0 %v925, 64
    %v927 = vpop.permute.xlu0 %926
    %s929 = scalar_lea.vmem [#allocation3], 28
    %930 = vst.msk [vmem:[%s929] sm:$0xf] %vm362, %v927
    %v931 = vld [vmem:[#allocation3] sm:$0xf]
    %v932 = vld [vmem:[#allocation3 + $0x4] sm:$0xf]
    %v933 = vld [vmem:[#allocation3 + $0x8] sm:$0xf]
    %v934 = vld [vmem:[#allocation3 + $0xc] sm:$0xf]
    %v935 = vld [vmem:[#allocation3 + $0x10] sm:$0xf]
    %v936 = vld [vmem:[#allocation3 + $0x14] sm:$0xf]
    %v937 = vld [vmem:[#allocation3 + $0x18] sm:$0xf]
    %v938 = vld [vmem:[#allocation3 + $0x1c] sm:$0xf]
    %v939 = vld [vmem:[#allocation12] sm:$0xf]
    %v940 = vld [vmem:[#allocation12 + $0x4] sm:$0xf]
    %v941 = vld [vmem:[#allocation12 + $0x8] sm:$0xf]
    %v942 = vld [vmem:[#allocation12 + $0xc] sm:$0xf]
    %v943 = vld [vmem:[%s8] sm:$0x1]
    %v945 = vlaneseq
    %v946 = vshrl.u32 %v945, 7
    %v947 = vsub.s32 0, %v946
    %v948 = vrot.slane %v943, %v947
    %v958 = vunpack.c.l.b16 %v931
    %v959 = vunpack.c.l.b16 %v932
    %v960 = vunpack.c.l.b16 %v933
    %v961 = vunpack.c.l.b16 %v934
    %v962 = vunpack.c.l.b16 %v935
    %v963 = vunpack.c.l.b16 %v936
    %v964 = vunpack.c.l.b16 %v937
    %v965 = vunpack.c.l.b16 %v938
    %v966 = vpack.c.b16 %v959, %v958
    %v967 = vpack.c.b16 %v961, %v960
    %v968 = vpack.c.b16 %v963, %v962
    %v969 = vpack.c.b16 %v965, %v964
    %v974 = vunpack.c.l.b16 %v939
    %v975 = vunpack.c.l.b16 %v940
    %v976 = vunpack.c.l.b16 %v941
    %v977 = vunpack.c.l.b16 %v942
    %v978 = vpack.c.b16 %v975, %v974
    %v979 = vpack.c.b16 %v977, %v976
    %v983 = vsel %vm177, %v966, 0
    %v986 = vsel %vm177, %v967, 0
    %v989 = vsel %vm177, %v968, 0
    %v992 = vsel %vm177, %v969, 0
    %994 = vmatprep.subr.bf16.mxu0 0
    %995 = vmatpush1.bf16.msra.mxu0 %v978
    %996 = vmatprep.subr.bf16.mxu0 0
    %997 = vmatpush1.bf16.msra.mxu0 %v979
    %998 = vmatprep.subr.bf16.mxu0 0
    %999 = vmatpush1.bf16.msra.mxu0 0
    %1000 = vmatprep.subr.bf16.mxu0 0
    %1001 = vmatpush1.bf16.msra.mxu0 0
    %1002 = vmatprep.subr.bf16.mxu0 0
    %1003 = vmatpush1.bf16.msra.mxu0 0
    %1004 = vmatprep.subr.bf16.mxu0 0
    %1005 = vmatpush1.bf16.msra.mxu0 0
    %1006 = vmatprep.subr.bf16.mxu0 0
    %1007 = vmatpush1.bf16.msra.mxu0 0
    %1008 = vmatprep.subr.bf16.mxu0 0
    %1009 = vmatpush1.bf16.msra.mxu0 0
    %1010 = vmatprep.subr.bf16.mxu0 0
    %1011 = vmatpush1.bf16.msra.mxu0 0
    %1012 = vmatprep.subr.bf16.mxu0 0
    %1013 = vmatpush1.bf16.msra.mxu0 0
    %1014 = vmatprep.subr.bf16.mxu0 0
    %1015 = vmatpush1.bf16.msra.mxu0 0
    %1016 = vmatprep.subr.bf16.mxu0 0
    %1017 = vmatpush1.bf16.msra.mxu0 0
    %1018 = vmatprep.subr.bf16.mxu0 0
    %1019 = vmatpush1.bf16.msra.mxu0 0
    %1020 = vmatprep.subr.bf16.mxu0 0
    %1021 = vmatpush1.bf16.msra.mxu0 0
    %1022 = vmatprep.subr.bf16.mxu0 0
    %1023 = vmatpush1.bf16.msra.mxu0 0
    %1024 = vmatprep.subr.bf16.mxu0 0
    %1025 = vmatpush1.bf16.msra.mxu0 0
    %1026 = vmatprep.mubr.bf16.mxu0 0
    %1027 = vmatmul.mubr.bf16.gmra.mrb[0].mxu0 %v983
    %v1028 = vpop.f32.mrb[0].mxu0
    %v1029 = vadd.f32 %v948, %v1028
    %v1030 = vpop.f32.mrb[0].mxu0
    %v1031 = vpop.f32.mrb[0].mxu0
    %v1032 = vadd.f32 %v948, %v1031
    %v1033 = vpop.f32.mrb[0].mxu0
    %1034 = vmatprep.mubr.bf16.mxu0 0
    %1035 = vmatmul.mubr.bf16.gmra.mrb[0].mxu0 %v986
    %v1036 = vpop.f32.mrb[0].mxu0
    %v1037 = vadd.f32 %v948, %v1036
    %v1038 = vpop.f32.mrb[0].mxu0
    %v1039 = vpop.f32.mrb[0].mxu0
    %v1040 = vadd.f32 %v948, %v1039
    %v1041 = vpop.f32.mrb[0].mxu0
    %1042 = vmatprep.mubr.bf16.mxu0 0
    %1043 = vmatmul.mubr.bf16.gmra.mrb[0].mxu0 %v989
    %v1044 = vpop.f32.mrb[0].mxu0
    %v1045 = vadd.f32 %v948, %v1044
    %v1046 = vpop.f32.mrb[0].mxu0
    %v1047 = vpop.f32.mrb[0].mxu0
    %v1048 = vadd.f32 %v948, %v1047
    %v1049 = vpop.f32.mrb[0].mxu0
    %1050 = vmatprep.mubr.bf16.mxu0 0
    %1051 = vmatmul.mubr.bf16.gmra.mrb[0].mxu0 %v992
    %v1052 = vpop.f32.mrb[0].mxu0
    %v1053 = vadd.f32 %v948, %v1052
    %v1054 = vpop.f32.mrb[0].mxu0
    %v1055 = vpop.f32.mrb[0].mxu0
    %v1056 = vadd.f32 %v948, %v1055
    %v1057 = vpop.f32.mrb[0].mxu0
    %1058 = vdwg.mxu0
    %1059 = vst [vmem:[#allocation2] sm:$0xff] %v1029
    %1060 = vst [vmem:[#allocation2 + $0x8] sm:$0xff] %v1032
    %1061 = vst [vmem:[#allocation2 + $0x10] sm:$0xff] %v1037
    %1062 = vst [vmem:[#allocation2 + $0x18] sm:$0xff] %v1040
    %1063 = vst [vmem:[#allocation2 + $0x20] sm:$0xff] %v1045
    %1064 = vst [vmem:[#allocation2 + $0x28] sm:$0xff] %v1048
    %1065 = vst [vmem:[#allocation2 + $0x30] sm:$0xff] %v1053
    %1066 = vst [vmem:[#allocation2 + $0x38] sm:$0xff] %v1056
    %v1067 = vld [vmem:[#allocation13] sm:$0xf]
    %v1068 = vld [vmem:[#allocation13 + $0x4] sm:$0xf]
    %v1069 = vld [vmem:[#allocation13 + $0x8] sm:$0xf]
    %v1070 = vld [vmem:[#allocation13 + $0xc] sm:$0xf]
    %s1071 = scalar_lea.vmem [#allocation7], 8
    %v1072 = vld [vmem:[%s1071] sm:$0xff]
    %s1073 = scalar_lea.vmem [#allocation9], 8
    %v1074 = vld [vmem:[%s1073] sm:$0xff]
    %v1075 = vld [vmem:[#allocation2] sm:$0xff]
    %v1076 = vpack.c.bf16 %v1072, %v1072
    %v1081 = vunpack.c.l.b16 %v1067
    %v1082 = vunpack.c.l.b16 %v1068
    %v1083 = vunpack.c.l.b16 %v1069
    %v1084 = vunpack.c.l.b16 %v1070
    %v1085 = vpack.c.b16 %v1082, %v1081
    %v1086 = vpack.c.b16 %v1084, %v1083
    %v1090 = vsel %vm177, %v1076, 0
    %1092 = vmatprep.subr.bf16.mxu0 0
    %1093 = vmatpush1.bf16.msra.mxu0 %v1085
    %1094 = vmatprep.subr.bf16.mxu0 0
    %1095 = vmatpush1.bf16.msra.mxu0 %v1086
    %1096 = vmatprep.subr.bf16.mxu0 0
    %1097 = vmatpush1.bf16.msra.mxu0 0
    %1098 = vmatprep.subr.bf16.mxu0 0
    %1099 = vmatpush1.bf16.msra.mxu0 0
    %1100 = vmatprep.subr.bf16.mxu0 0
    %1101 = vmatpush1.bf16.msra.mxu0 0
    %1102 = vmatprep.subr.bf16.mxu0 0
    %1103 = vmatpush1.bf16.msra.mxu0 0
    %1104 = vmatprep.subr.bf16.mxu0 0
    %1105 = vmatpush1.bf16.msra.mxu0 0
    %1106 = vmatprep.subr.bf16.mxu0 0
    %1107 = vmatpush1.bf16.msra.mxu0 0
    %1108 = vmatprep.subr.bf16.mxu0 0
    %1109 = vmatpush1.bf16.msra.mxu0 0
    %1110 = vmatprep.subr.bf16.mxu0 0
    %1111 = vmatpush1.bf16.msra.mxu0 0
    %1112 = vmatprep.subr.bf16.mxu0 0
    %1113 = vmatpush1.bf16.msra.mxu0 0
    %1114 = vmatprep.subr.bf16.mxu0 0
    %1115 = vmatpush1.bf16.msra.mxu0 0
    %1116 = vmatprep.subr.bf16.mxu0 0
    %1117 = vmatpush1.bf16.msra.mxu0 0
    %1118 = vmatprep.subr.bf16.mxu0 0
    %1119 = vmatpush1.bf16.msra.mxu0 0
    %1120 = vmatprep.subr.bf16.mxu0 0
    %1121 = vmatpush1.bf16.msra.mxu0 0
    %1122 = vmatprep.subr.bf16.mxu0 0
    %1123 = vmatpush1.bf16.msra.mxu0 0
    %1124 = vmatprep.mubr.bf16.mxu0 0
    %1125 = vmatmul.mubr.bf16.gmra.mrb[0].mxu0 %v1090
    %v1126 = vpop.f32.mrb[0].mxu0
    %v1127 = vadd.f32 0.0, %v1126
    %v1128 = vpop.f32.mrb[0].mxu0
    %v1129 = vpop.f32.mrb[0].mxu0
    %v1130 = vpop.f32.mrb[0].mxu0
    %1131 = vdwg.mxu0
    %v1132 = vadd.f32 %v1075, %v1127
    %v1133 = vxor.u32 %v1132, 2147483648
    %v1134 = vmul.f32 %v1133, 1.442695
    %v1135 = vpow.pop %v1134
    %v1136 = vadd.f32 %v1135, 1.0
    %v1137 = vrcp.pop %v1136
    %v1138 = vmul.f32 1.0, %v1137
    %v1139 = vtanh.pop %v1132
    %1141 = vrot.lane.b32.xlu0 %v1074, 32
    %v1142 = vpop.permute.xlu0 %1141
    %v1144 = vmul.f32 %v1138, %v1142
    %1146 = vrot.lane.b32.xlu0 %v1139, 32
    %v1147 = vpop.permute.xlu0 %1146
    %v1149 = vmul.f32 %v1138, %v1147
    %1151 = vrot.lane.b32.xlu0 %v1149, 32
    %v1152 = vpop.permute.xlu0 %1151
    %v1154 = vadd.f32 %v1144, %v1152
    %v1155 = vtanh.pop %v1154
    %1157 = vrot.lane.b32.xlu0 %v1155, 32
    %v1158 = vpop.permute.xlu0 %1157
    %v1160 = vmul.f32 %v1138, %v1158
    %v1161 = vld [vmem:[%s364] sm:$0xff]
    %v1162 = vpack.c.bf16 %v1160, %v1160
    %1164 = vrot.lane.b32.xlu0 %v1162, 64
    %v1165 = vpop.permute.xlu0 %1164
    %v1167 = vsel %vm177, %v1165, 0
    %1169 = vmatprep.subr.bf16.mxu0 0
    %1170 = vmatpush1.bf16.msra.mxu0 %v1085
    %1171 = vmatprep.subr.bf16.mxu0 0
    %1172 = vmatpush1.bf16.msra.mxu0 %v1086
    %1173 = vmatprep.subr.bf16.mxu0 0
    %1174 = vmatpush1.bf16.msra.mxu0 0
    %1175 = vmatprep.subr.bf16.mxu0 0
    %1176 = vmatpush1.bf16.msra.mxu0 0
    %1177 = vmatprep.subr.bf16.mxu0 0
    %1178 = vmatpush1.bf16.msra.mxu0 0
    %1179 = vmatprep.subr.bf16.mxu0 0
    %1180 = vmatpush1.bf16.msra.mxu0 0
    %1181 = vmatprep.subr.bf16.mxu0 0
    %1182 = vmatpush1.bf16.msra.mxu0 0
    %1183 = vmatprep.subr.bf16.mxu0 0
    %1184 = vmatpush1.bf16.msra.mxu0 0
    %1185 = vmatprep.subr.bf16.mxu0 0
    %1186 = vmatpush1.bf16.msra.mxu0 0
    %1187 = vmatprep.subr.bf16.mxu0 0
    %1188 = vmatpush1.bf16.msra.mxu0 0
    %1189 = vmatprep.subr.bf16.mxu0 0
    %1190 = vmatpush1.bf16.msra.mxu0 0
    %1191 = vmatprep.subr.bf16.mxu0 0
    %1192 = vmatpush1.bf16.msra.mxu0 0
    %1193 = vmatprep.subr.bf16.mxu0 0
    %1194 = vmatpush1.bf16.msra.mxu0 0
    %1195 = vmatprep.subr.bf16.mxu0 0
    %1196 = vmatpush1.bf16.msra.mxu0 0
    %1197 = vmatprep.subr.bf16.mxu0 0
    %1198 = vmatpush1.bf16.msra.mxu0 0
    %1199 = vmatprep.subr.bf16.mxu0 0
    %1200 = vmatpush1.bf16.msra.mxu0 0
    %1201 = vmatprep.mubr.bf16.mxu0 0
    %1202 = vmatmul.mubr.bf16.gmra.mrb[0].mxu0 %v1167
    %v1203 = vpop.f32.mrb[0].mxu0
    %v1204 = vadd.f32 0.0, %v1203
    %v1205 = vpop.f32.mrb[0].mxu0
    %v1206 = vpop.f32.mrb[0].mxu0
    %v1207 = vpop.f32.mrb[0].mxu0
    %1208 = vdwg.mxu0
    %v1209 = vadd.f32 %v1161, %v1204
    %v1210 = vxor.u32 %v1209, 2147483648
    %v1211 = vmul.f32 %v1210, 1.442695
    %v1212 = vpow.pop %v1211
    %v1213 = vadd.f32 %v1212, 1.0
    %v1214 = vrcp.pop %v1213
    %v1215 = vmul.f32 1.0, %v1214
    %v1216 = vtanh.pop %v1209
    %v1217 = vmul.f32 %v1215, %v1154
    %1219 = vrot.lane.b32.xlu0 %v1216, 32
    %v1220 = vpop.permute.xlu0 %1219
    %v1222 = vmul.f32 %v1215, %v1220
    %1224 = vrot.lane.b32.xlu0 %v1222, 32
    %v1225 = vpop.permute.xlu0 %1224
    %v1227 = vadd.f32 %v1217, %v1225
    %v1228 = vtanh.pop %v1227
    %1230 = vrot.lane.b32.xlu0 %v1228, 32
    %v1231 = vpop.permute.xlu0 %1230
    %v1233 = vmul.f32 %v1215, %v1231
    %v1234 = vld [vmem:[%s445] sm:$0xff]
    %v1235 = vpack.c.bf16 %v1233, %v1233
    %1237 = vrot.lane.b32.xlu0 %v1235, 64
    %v1238 = vpop.permute.xlu0 %1237
    %v1240 = vsel %vm177, %v1238, 0
    %1242 = vmatprep.subr.bf16.mxu0 0
    %1243 = vmatpush1.bf16.msra.mxu0 %v1085
    %1244 = vmatprep.subr.bf16.mxu0 0
    %1245 = vmatpush1.bf16.msra.mxu0 %v1086
    %1246 = vmatprep.subr.bf16.mxu0 0
    %1247 = vmatpush1.bf16.msra.mxu0 0
    %1248 = vmatprep.subr.bf16.mxu0 0
    %1249 = vmatpush1.bf16.msra.mxu0 0
    %1250 = vmatprep.subr.bf16.mxu0 0
    %1251 = vmatpush1.bf16.msra.mxu0 0
    %1252 = vmatprep.subr.bf16.mxu0 0
    %1253 = vmatpush1.bf16.msra.mxu0 0
    %1254 = vmatprep.subr.bf16.mxu0 0
    %1255 = vmatpush1.bf16.msra.mxu0 0
    %1256 = vmatprep.subr.bf16.mxu0 0
    %1257 = vmatpush1.bf16.msra.mxu0 0
    %1258 = vmatprep.subr.bf16.mxu0 0
    %1259 = vmatpush1.bf16.msra.mxu0 0
    %1260 = vmatprep.subr.bf16.mxu0 0
    %1261 = vmatpush1.bf16.msra.mxu0 0
    %1262 = vmatprep.subr.bf16.mxu0 0
    %1263 = vmatpush1.bf16.msra.mxu0 0
    %1264 = vmatprep.subr.bf16.mxu0 0
    %1265 = vmatpush1.bf16.msra.mxu0 0
    %1266 = vmatprep.subr.bf16.mxu0 0
    %1267 = vmatpush1.bf16.msra.mxu0 0
    %1268 = vmatprep.subr.bf16.mxu0 0
    %1269 = vmatpush1.bf16.msra.mxu0 0
    %1270 = vmatprep.subr.bf16.mxu0 0
    %1271 = vmatpush1.bf16.msra.mxu0 0
    %1272 = vmatprep.subr.bf16.mxu0 0
    %1273 = vmatpush1.bf16.msra.mxu0 0
    %1274 = vmatprep.mubr.bf16.mxu0 0
    %1275 = vmatmul.mubr.bf16.gmra.mrb[0].mxu0 %v1240
    %v1276 = vpop.f32.mrb[0].mxu0
    %v1277 = vadd.f32 0.0, %v1276
    %v1278 = vpop.f32.mrb[0].mxu0
    %v1279 = vpop.f32.mrb[0].mxu0
    %v1280 = vpop.f32.mrb[0].mxu0
    %1281 = vdwg.mxu0
    %v1282 = vadd.f32 %v1234, %v1277
    %v1283 = vxor.u32 %v1282, 2147483648
    %v1284 = vmul.f32 %v1283, 1.442695
    %v1285 = vpow.pop %v1284
    %v1286 = vadd.f32 %v1285, 1.0
    %v1287 = vrcp.pop %v1286
    %v1288 = vmul.f32 1.0, %v1287
    %v1289 = vtanh.pop %v1282
    %v1290 = vmul.f32 %v1288, %v1227
    %1292 = vrot.lane.b32.xlu0 %v1289, 32
    %v1293 = vpop.permute.xlu0 %1292
    %v1295 = vmul.f32 %v1288, %v1293
    %1297 = vrot.lane.b32.xlu0 %v1295, 32
    %v1298 = vpop.permute.xlu0 %1297
    %v1300 = vadd.f32 %v1290, %v1298
    %v1301 = vtanh.pop %v1300
    %1303 = vrot.lane.b32.xlu0 %v1301, 32
    %v1304 = vpop.permute.xlu0 %1303
    %v1306 = vmul.f32 %v1288, %v1304
    %v1307 = vld [vmem:[%s526] sm:$0xff]
    %v1308 = vpack.c.bf16 %v1306, %v1306
    %1310 = vrot.lane.b32.xlu0 %v1308, 64
    %v1311 = vpop.permute.xlu0 %1310
    %v1313 = vsel %vm177, %v1311, 0
    %1315 = vmatprep.subr.bf16.mxu0 0
    %1316 = vmatpush1.bf16.msra.mxu0 %v1085
    %1317 = vmatprep.subr.bf16.mxu0 0
    %1318 = vmatpush1.bf16.msra.mxu0 %v1086
    %1319 = vmatprep.subr.bf16.mxu0 0
    %1320 = vmatpush1.bf16.msra.mxu0 0
    %1321 = vmatprep.subr.bf16.mxu0 0
    %1322 = vmatpush1.bf16.msra.mxu0 0
    %1323 = vmatprep.subr.bf16.mxu0 0
    %1324 = vmatpush1.bf16.msra.mxu0 0
    %1325 = vmatprep.subr.bf16.mxu0 0
    %1326 = vmatpush1.bf16.msra.mxu0 0
    %1327 = vmatprep.subr.bf16.mxu0 0
    %1328 = vmatpush1.bf16.msra.mxu0 0
    %1329 = vmatprep.subr.bf16.mxu0 0
    %1330 = vmatpush1.bf16.msra.mxu0 0
    %1331 = vmatprep.subr.bf16.mxu0 0
    %1332 = vmatpush1.bf16.msra.mxu0 0
    %1333 = vmatprep.subr.bf16.mxu0 0
    %1334 = vmatpush1.bf16.msra.mxu0 0
    %1335 = vmatprep.subr.bf16.mxu0 0
    %1336 = vmatpush1.bf16.msra.mxu0 0
    %1337 = vmatprep.subr.bf16.mxu0 0
    %1338 = vmatpush1.bf16.msra.mxu0 0
    %1339 = vmatprep.subr.bf16.mxu0 0
    %1340 = vmatpush1.bf16.msra.mxu0 0
    %1341 = vmatprep.subr.bf16.mxu0 0
    %1342 = vmatpush1.bf16.msra.mxu0 0
    %1343 = vmatprep.subr.bf16.mxu0 0
    %1344 = vmatpush1.bf16.msra.mxu0 0
    %1345 = vmatprep.subr.bf16.mxu0 0
    %1346 = vmatpush1.bf16.msra.mxu0 0
    %1347 = vmatprep.mubr.bf16.mxu0 0
    %1348 = vmatmul.mubr.bf16.gmra.mrb[0].mxu0 %v1313
    %v1349 = vpop.f32.mrb[0].mxu0
    %v1350 = vadd.f32 0.0, %v1349
    %v1351 = vpop.f32.mrb[0].mxu0
    %v1352 = vpop.f32.mrb[0].mxu0
    %v1353 = vpop.f32.mrb[0].mxu0
    %1354 = vdwg.mxu0
    %v1355 = vadd.f32 %v1307, %v1350
    %v1356 = vxor.u32 %v1355, 2147483648
    %v1357 = vmul.f32 %v1356, 1.442695
    %v1358 = vpow.pop %v1357
    %v1359 = vadd.f32 %v1358, 1.0
    %v1360 = vrcp.pop %v1359
    %v1361 = vmul.f32 1.0, %v1360
    %v1362 = vtanh.pop %v1355
    %v1363 = vmul.f32 %v1361, %v1300
    %1365 = vrot.lane.b32.xlu0 %v1362, 32
    %v1366 = vpop.permute.xlu0 %1365
    %v1368 = vmul.f32 %v1361, %v1366
    %1370 = vrot.lane.b32.xlu0 %v1368, 32
    %v1371 = vpop.permute.xlu0 %1370
    %v1373 = vadd.f32 %v1363, %v1371
    %v1374 = vtanh.pop %v1373
    %1376 = vrot.lane.b32.xlu0 %v1374, 32
    %v1377 = vpop.permute.xlu0 %1376
    %v1379 = vmul.f32 %v1361, %v1377
    %v1380 = vld [vmem:[%s607] sm:$0xff]
    %v1381 = vpack.c.bf16 %v1379, %v1379
    %1383 = vrot.lane.b32.xlu0 %v1381, 64
    %v1384 = vpop.permute.xlu0 %1383
    %v1386 = vsel %vm177, %v1384, 0
    %1388 = vmatprep.subr.bf16.mxu0 0
    %1389 = vmatpush1.bf16.msra.mxu0 %v1085
    %1390 = vmatprep.subr.bf16.mxu0 0
    %1391 = vmatpush1.bf16.msra.mxu0 %v1086
    %1392 = vmatprep.subr.bf16.mxu0 0
    %1393 = vmatpush1.bf16.msra.mxu0 0
    %1394 = vmatprep.subr.bf16.mxu0 0
    %1395 = vmatpush1.bf16.msra.mxu0 0
    %1396 = vmatprep.subr.bf16.mxu0 0
    %1397 = vmatpush1.bf16.msra.mxu0 0
    %1398 = vmatprep.subr.bf16.mxu0 0
    %1399 = vmatpush1.bf16.msra.mxu0 0
    %1400 = vmatprep.subr.bf16.mxu0 0
    %1401 = vmatpush1.bf16.msra.mxu0 0
    %1402 = vmatprep.subr.bf16.mxu0 0
    %1403 = vmatpush1.bf16.msra.mxu0 0
    %1404 = vmatprep.subr.bf16.mxu0 0
    %1405 = vmatpush1.bf16.msra.mxu0 0
    %1406 = vmatprep.subr.bf16.mxu0 0
    %1407 = vmatpush1.bf16.msra.mxu0 0
    %1408 = vmatprep.subr.bf16.mxu0 0
    %1409 = vmatpush1.bf16.msra.mxu0 0
    %1410 = vmatprep.subr.bf16.mxu0 0
    %1411 = vmatpush1.bf16.msra.mxu0 0
    %1412 = vmatprep.subr.bf16.mxu0 0
    %1413 = vmatpush1.bf16.msra.mxu0 0
    %1414 = vmatprep.subr.bf16.mxu0 0
    %1415 = vmatpush1.bf16.msra.mxu0 0
    %1416 = vmatprep.subr.bf16.mxu0 0
    %1417 = vmatpush1.bf16.msra.mxu0 0
    %1418 = vmatprep.subr.bf16.mxu0 0
    %1419 = vmatpush1.bf16.msra.mxu0 0
    %1420 = vmatprep.mubr.bf16.mxu0 0
    %1421 = vmatmul.mubr.bf16.gmra.mrb[0].mxu0 %v1386
    %v1422 = vpop.f32.mrb[0].mxu0
    %v1423 = vadd.f32 0.0, %v1422
    %v1424 = vpop.f32.mrb[0].mxu0
    %v1425 = vpop.f32.mrb[0].mxu0
    %v1426 = vpop.f32.mrb[0].mxu0
    %1427 = vdwg.mxu0
    %v1428 = vadd.f32 %v1380, %v1423
    %v1429 = vxor.u32 %v1428, 2147483648
    %v1430 = vmul.f32 %v1429, 1.442695
    %v1431 = vpow.pop %v1430
    %v1432 = vadd.f32 %v1431, 1.0
    %v1433 = vrcp.pop %v1432
    %v1434 = vmul.f32 1.0, %v1433
    %v1435 = vtanh.pop %v1428
    %v1436 = vmul.f32 %v1434, %v1373
    %1438 = vrot.lane.b32.xlu0 %v1435, 32
    %v1439 = vpop.permute.xlu0 %1438
    %v1441 = vmul.f32 %v1434, %v1439
    %1443 = vrot.lane.b32.xlu0 %v1441, 32
    %v1444 = vpop.permute.xlu0 %1443
    %v1446 = vadd.f32 %v1436, %v1444
    %v1447 = vtanh.pop %v1446
    %1449 = vrot.lane.b32.xlu0 %v1447, 32
    %v1450 = vpop.permute.xlu0 %1449
    %v1452 = vmul.f32 %v1434, %v1450
    %v1453 = vld [vmem:[%s688] sm:$0xff]
    %v1454 = vpack.c.bf16 %v1452, %v1452
    %1456 = vrot.lane.b32.xlu0 %v1454, 64
    %v1457 = vpop.permute.xlu0 %1456
    %v1459 = vsel %vm177, %v1457, 0
    %1461 = vmatprep.subr.bf16.mxu0 0
    %1462 = vmatpush1.bf16.msra.mxu0 %v1085
    %1463 = vmatprep.subr.bf16.mxu0 0
    %1464 = vmatpush1.bf16.msra.mxu0 %v1086
    %1465 = vmatprep.subr.bf16.mxu0 0
    %1466 = vmatpush1.bf16.msra.mxu0 0
    %1467 = vmatprep.subr.bf16.mxu0 0
    %1468 = vmatpush1.bf16.msra.mxu0 0
    %1469 = vmatprep.subr.bf16.mxu0 0
    %1470 = vmatpush1.bf16.msra.mxu0 0
    %1471 = vmatprep.subr.bf16.mxu0 0
    %1472 = vmatpush1.bf16.msra.mxu0 0
    %1473 = vmatprep.subr.bf16.mxu0 0
    %1474 = vmatpush1.bf16.msra.mxu0 0
    %1475 = vmatprep.subr.bf16.mxu0 0
    %1476 = vmatpush1.bf16.msra.mxu0 0
    %1477 = vmatprep.subr.bf16.mxu0 0
    %1478 = vmatpush1.bf16.msra.mxu0 0
    %1479 = vmatprep.subr.bf16.mxu0 0
    %1480 = vmatpush1.bf16.msra.mxu0 0
    %1481 = vmatprep.subr.bf16.mxu0 0
    %1482 = vmatpush1.bf16.msra.mxu0 0
    %1483 = vmatprep.subr.bf16.mxu0 0
    %1484 = vmatpush1.bf16.msra.mxu0 0
    %1485 = vmatprep.subr.bf16.mxu0 0
    %1486 = vmatpush1.bf16.msra.mxu0 0
    %1487 = vmatprep.subr.bf16.mxu0 0
    %1488 = vmatpush1.bf16.msra.mxu0 0
    %1489 = vmatprep.subr.bf16.mxu0 0
    %1490 = vmatpush1.bf16.msra.mxu0 0
    %1491 = vmatprep.subr.bf16.mxu0 0
    %1492 = vmatpush1.bf16.msra.mxu0 0
    %1493 = vmatprep.mubr.bf16.mxu0 0
    %1494 = vmatmul.mubr.bf16.gmra.mrb[0].mxu0 %v1459
    %v1495 = vpop.f32.mrb[0].mxu0
    %v1496 = vadd.f32 0.0, %v1495
    %v1497 = vpop.f32.mrb[0].mxu0
    %v1498 = vpop.f32.mrb[0].mxu0
    %v1499 = vpop.f32.mrb[0].mxu0
    %1500 = vdwg.mxu0
    %v1501 = vadd.f32 %v1453, %v1496
    %v1502 = vxor.u32 %v1501, 2147483648
    %v1503 = vmul.f32 %v1502, 1.442695
    %v1504 = vpow.pop %v1503
    %v1505 = vadd.f32 %v1504, 1.0
    %v1506 = vrcp.pop %v1505
    %v1507 = vmul.f32 1.0, %v1506
    %v1508 = vtanh.pop %v1501
    %v1509 = vmul.f32 %v1507, %v1446
    %1511 = vrot.lane.b32.xlu0 %v1508, 32
    %v1512 = vpop.permute.xlu0 %1511
    %v1514 = vmul.f32 %v1507, %v1512
    %1516 = vrot.lane.b32.xlu0 %v1514, 32
    %v1517 = vpop.permute.xlu0 %1516
    %v1519 = vadd.f32 %v1509, %v1517
    %v1520 = vtanh.pop %v1519
    %1522 = vrot.lane.b32.xlu0 %v1520, 32
    %v1523 = vpop.permute.xlu0 %1522
    %v1525 = vmul.f32 %v1507, %v1523
    %v1526 = vld [vmem:[%s769] sm:$0xff]
    %v1527 = vpack.c.bf16 %v1525, %v1525
    %1529 = vrot.lane.b32.xlu0 %v1527, 64
    %v1530 = vpop.permute.xlu0 %1529
    %v1532 = vsel %vm177, %v1530, 0
    %1534 = vmatprep.subr.bf16.mxu0 0
    %1535 = vmatpush1.bf16.msra.mxu0 %v1085
    %1536 = vmatprep.subr.bf16.mxu0 0
    %1537 = vmatpush1.bf16.msra.mxu0 %v1086
    %1538 = vmatprep.subr.bf16.mxu0 0
    %1539 = vmatpush1.bf16.msra.mxu0 0
    %1540 = vmatprep.subr.bf16.mxu0 0
    %1541 = vmatpush1.bf16.msra.mxu0 0
    %1542 = vmatprep.subr.bf16.mxu0 0
    %1543 = vmatpush1.bf16.msra.mxu0 0
    %1544 = vmatprep.subr.bf16.mxu0 0
    %1545 = vmatpush1.bf16.msra.mxu0 0
    %1546 = vmatprep.subr.bf16.mxu0 0
    %1547 = vmatpush1.bf16.msra.mxu0 0
    %1548 = vmatprep.subr.bf16.mxu0 0
    %1549 = vmatpush1.bf16.msra.mxu0 0
    %1550 = vmatprep.subr.bf16.mxu0 0
    %1551 = vmatpush1.bf16.msra.mxu0 0
    %1552 = vmatprep.subr.bf16.mxu0 0
    %1553 = vmatpush1.bf16.msra.mxu0 0
    %1554 = vmatprep.subr.bf16.mxu0 0
    %1555 = vmatpush1.bf16.msra.mxu0 0
    %1556 = vmatprep.subr.bf16.mxu0 0
    %1557 = vmatpush1.bf16.msra.mxu0 0
    %1558 = vmatprep.subr.bf16.mxu0 0
    %1559 = vmatpush1.bf16.msra.mxu0 0
    %1560 = vmatprep.subr.bf16.mxu0 0
    %1561 = vmatpush1.bf16.msra.mxu0 0
    %1562 = vmatprep.subr.bf16.mxu0 0
    %1563 = vmatpush1.bf16.msra.mxu0 0
    %1564 = vmatprep.subr.bf16.mxu0 0
    %1565 = vmatpush1.bf16.msra.mxu0 0
    %1566 = vmatprep.mubr.bf16.mxu0 0
    %1567 = vmatmul.mubr.bf16.gmra.mrb[0].mxu0 %v1532
    %v1568 = vpop.f32.mrb[0].mxu0
    %v1569 = vadd.f32 0.0, %v1568
    %v1570 = vpop.f32.mrb[0].mxu0
    %v1571 = vpop.f32.mrb[0].mxu0
    %v1572 = vpop.f32.mrb[0].mxu0
    %1573 = vdwg.mxu0
    %v1574 = vadd.f32 %v1526, %v1569
    %v1575 = vxor.u32 %v1574, 2147483648
    %v1576 = vmul.f32 %v1575, 1.442695
    %v1577 = vpow.pop %v1576
    %v1578 = vadd.f32 %v1577, 1.0
    %v1579 = vrcp.pop %v1578
    %v1580 = vmul.f32 1.0, %v1579
    %v1581 = vtanh.pop %v1574
    %v1582 = vmul.f32 %v1580, %v1519
    %1584 = vrot.lane.b32.xlu0 %v1581, 32
    %v1585 = vpop.permute.xlu0 %1584
    %v1587 = vmul.f32 %v1580, %v1585
    %1589 = vrot.lane.b32.xlu0 %v1587, 32
    %v1590 = vpop.permute.xlu0 %1589
    %v1592 = vadd.f32 %v1582, %v1590
    %v1593 = vtanh.pop %v1592
    %1595 = vrot.lane.b32.xlu0 %v1593, 32
    %v1596 = vpop.permute.xlu0 %1595
    %v1598 = vmul.f32 %v1580, %v1596
    %v1599 = vld [vmem:[%s850] sm:$0xff]
    %v1600 = vpack.c.bf16 %v1598, %v1598
    %1602 = vrot.lane.b32.xlu0 %v1600, 64
    %v1603 = vpop.permute.xlu0 %1602
    %v1605 = vsel %vm177, %v1603, 0
    %1607 = vmatprep.subr.bf16.mxu0 0
    %1608 = vmatpush1.bf16.msra.mxu0 %v1085
    %1609 = vmatprep.subr.bf16.mxu0 0
    %1610 = vmatpush1.bf16.msra.mxu0 %v1086
    %1611 = vmatprep.subr.bf16.mxu0 0
    %1612 = vmatpush1.bf16.msra.mxu0 0
    %1613 = vmatprep.subr.bf16.mxu0 0
    %1614 = vmatpush1.bf16.msra.mxu0 0
    %1615 = vmatprep.subr.bf16.mxu0 0
    %1616 = vmatpush1.bf16.msra.mxu0 0
    %1617 = vmatprep.subr.bf16.mxu0 0
    %1618 = vmatpush1.bf16.msra.mxu0 0
    %1619 = vmatprep.subr.bf16.mxu0 0
    %1620 = vmatpush1.bf16.msra.mxu0 0
    %1621 = vmatprep.subr.bf16.mxu0 0
    %1622 = vmatpush1.bf16.msra.mxu0 0
    %1623 = vmatprep.subr.bf16.mxu0 0
    %1624 = vmatpush1.bf16.msra.mxu0 0
    %1625 = vmatprep.subr.bf16.mxu0 0
    %1626 = vmatpush1.bf16.msra.mxu0 0
    %1627 = vmatprep.subr.bf16.mxu0 0
    %1628 = vmatpush1.bf16.msra.mxu0 0
    %1629 = vmatprep.subr.bf16.mxu0 0
    %1630 = vmatpush1.bf16.msra.mxu0 0
    %1631 = vmatprep.subr.bf16.mxu0 0
    %1632 = vmatpush1.bf16.msra.mxu0 0
    %1633 = vmatprep.subr.bf16.mxu0 0
    %1634 = vmatpush1.bf16.msra.mxu0 0
    %1635 = vmatprep.subr.bf16.mxu0 0
    %1636 = vmatpush1.bf16.msra.mxu0 0
    %1637 = vmatprep.subr.bf16.mxu0 0
    %1638 = vmatpush1.bf16.msra.mxu0 0
    %1639 = vmatprep.mubr.bf16.mxu0 0
    %1640 = vmatmul.mubr.bf16.gmra.mrb[0].mxu0 %v1605
    %v1641 = vpop.f32.mrb[0].mxu0
    %v1642 = vadd.f32 0.0, %v1641
    %v1643 = vpop.f32.mrb[0].mxu0
    %v1644 = vpop.f32.mrb[0].mxu0
    %v1645 = vpop.f32.mrb[0].mxu0
    %1646 = vdwg.mxu0
    %v1647 = vadd.f32 %v1599, %v1642
    %v1648 = vxor.u32 %v1647, 2147483648
    %v1649 = vmul.f32 %v1648, 1.442695
    %v1650 = vpow.pop %v1649
    %v1651 = vadd.f32 %v1650, 1.0
    %v1652 = vrcp.pop %v1651
    %v1653 = vmul.f32 1.0, %v1652
    %v1654 = vtanh.pop %v1647
    %v1655 = vmul.f32 %v1653, %v1592
    %1657 = vrot.lane.b32.xlu0 %v1654, 32
    %v1658 = vpop.permute.xlu0 %1657
    %v1660 = vmul.f32 %v1653, %v1658
    %1662 = vrot.lane.b32.xlu0 %v1660, 32
    %v1663 = vpop.permute.xlu0 %1662
    %v1665 = vadd.f32 %v1655, %v1663
    %v1666 = vtanh.pop %v1665
    %1668 = vrot.lane.b32.xlu0 %v1666, 32
    %v1669 = vpop.permute.xlu0 %1668
    %v1671 = vmul.f32 %v1653, %v1669
    %v1672 = vpack.c.bf16 %v1671, %v1671
    %v1673 = vld [vmem:[%s9] sm:$0xf]
    %v1674 = vld [vmem:[%s9 + $0x4] sm:$0xf]
    %v1675 = vld [vmem:[%s9 + $0x8] sm:$0xf]
    %v1676 = vld [vmem:[%s9 + $0xc] sm:$0xf]
    %v1677 = vld [vmem:[%s10] sm:$0x1]
    %v1679 = vlaneseq
    %v1680 = vshrl.u32 %v1679, 7
    %v1681 = vsub.s32 0, %v1680
    %v1682 = vrot.slane %v1677, %v1681
    %1685 = vrot.lane.b32.xlu0 %v1672, 64
    %v1686 = vpop.permute.xlu0 %1685
    %v1691 = vunpack.c.l.b16 %v1673
    %v1692 = vunpack.c.l.b16 %v1674
    %v1693 = vunpack.c.l.b16 %v1675
    %v1694 = vunpack.c.l.b16 %v1676
    %v1695 = vpack.c.b16 %v1692, %v1691
    %v1696 = vpack.c.b16 %v1694, %v1693
    %v1700 = vsel %vm177, %v1686, 0
    %1702 = vmatprep.subr.bf16.mxu0 0
    %1703 = vmatpush1.bf16.msra.mxu0 %v1695
    %1704 = vmatprep.subr.bf16.mxu0 0
    %1705 = vmatpush1.bf16.msra.mxu0 %v1696
    %1706 = vmatprep.subr.bf16.mxu0 0
    %1707 = vmatpush1.bf16.msra.mxu0 0
    %1708 = vmatprep.subr.bf16.mxu0 0
    %1709 = vmatpush1.bf16.msra.mxu0 0
    %1710 = vmatprep.subr.bf16.mxu0 0
    %1711 = vmatpush1.bf16.msra.mxu0 0
    %1712 = vmatprep.subr.bf16.mxu0 0
    %1713 = vmatpush1.bf16.msra.mxu0 0
    %1714 = vmatprep.subr.bf16.mxu0 0
    %1715 = vmatpush1.bf16.msra.mxu0 0
    %1716 = vmatprep.subr.bf16.mxu0 0
    %1717 = vmatpush1.bf16.msra.mxu0 0
    %1718 = vmatprep.subr.bf16.mxu0 0
    %1719 = vmatpush1.bf16.msra.mxu0 0
    %1720 = vmatprep.subr.bf16.mxu0 0
    %1721 = vmatpush1.bf16.msra.mxu0 0
    %1722 = vmatprep.subr.bf16.mxu0 0
    %1723 = vmatpush1.bf16.msra.mxu0 0
    %1724 = vmatprep.subr.bf16.mxu0 0
    %1725 = vmatpush1.bf16.msra.mxu0 0
    %1726 = vmatprep.subr.bf16.mxu0 0
    %1727 = vmatpush1.bf16.msra.mxu0 0
    %1728 = vmatprep.subr.bf16.mxu0 0
    %1729 = vmatpush1.bf16.msra.mxu0 0
    %1730 = vmatprep.subr.bf16.mxu0 0
    %1731 = vmatpush1.bf16.msra.mxu0 0
    %1732 = vmatprep.subr.bf16.mxu0 0
    %1733 = vmatpush1.bf16.msra.mxu0 0
    %1734 = vmatprep.mubr.bf16.mxu0 0
    %1735 = vmatmul.mubr.bf16.gmra.mrb[0].mxu0 %v1700
    %v1736 = vpop.f32.mrb[0].mxu0
    %v1737 = vadd.f32 %v1682, %v1736
    %v1738 = vpop.f32.mrb[0].mxu0
    %v1739 = vpop.f32.mrb[0].mxu0
    %v1740 = vpop.f32.mrb[0].mxu0
    %1741 = vdwg.mxu0
    %1742 = vst [vmem:[#allocation15] sm:$0xff] %v1737
    %1745 = vrot.lane.b32.xlu0 %v921, 64
    %v1746 = vpop.permute.xlu0 %1745
    %1747 = vrot.lane.b32.xlu0 %v1671, 64
    %v1748 = vpop.permute.xlu0 %1747
    %1751 = vst.msk [vmem:[#allocation16] sm:$0xff] %vm177, %v1746
    %1752 = vst.msk [vmem:[#allocation16 + $0x8] sm:$0xff] %vm177, %v1748
    %1755 = vrot.lane.b32.xlu0 %v915, 96
    %v1756 = vpop.permute.xlu0 %1755
    %1757 = vrot.lane.b32.xlu0 %v1665, 96
    %v1758 = vpop.permute.xlu0 %1757
    %1761 = vst.msk [vmem:[#allocation18] sm:$0xff] %vm177, %v1756
    %1762 = vst.msk [vmem:[#allocation18 + $0x8] sm:$0xff] %vm177, %v1758
    // Predicated region
    $region70: #{tpu_custom_call.1} parent=1 // pred_check
      _
    $region71: #{tpu_custom_call.1} parent=1 // pred_check_branch
      %1764 = sbr.rel (0) target = $region73
    $region72: #{tpu_custom_call.1} parent=1 // pred_region
      %s1766 = ssub.s32 128, 128
      %1767 = vsyncadd [#allocation6], %s1766
      %s1769 = sshll.u32 [#allocation15], 4
      %s1770 = int_to_ptr.vmem [resolvable:$true] %s1769
      %1772 = dma.vmem_to_hbm [thread:$0]  %s1770, 128, %s11, [#allocation6]
    $region73: #{tpu_custom_call.1} parent=1 // pred_fallthru
      _
    // Predicated region
    $region74: #{tpu_custom_call.1} parent=1 // pred_check
      _
    $region75: #{tpu_custom_call.1} parent=1 // pred_check_branch
      %1774 = sbr.rel (0) target = $region77
    $region76: #{tpu_custom_call.1} parent=1 // pred_region
      %s1776 = ssub.s32 256, 256
      %1777 = vsyncadd [#allocation17], %s1776
      %s1778 = sshll.u32 [#allocation16], 4
      %s1779 = int_to_ptr.vmem [resolvable:$true] %s1778
      %1784 = dma.vmem_to_hbm [thread:$0]  %s1779, 256, %s12, [#allocation17], 128, 128, 8
    $region77: #{tpu_custom_call.1} parent=1 // pred_fallthru
      _
    // Predicated region
    $region78: #{tpu_custom_call.1} parent=1 // pred_check
      _
    $region79: #{tpu_custom_call.1} parent=1 // pred_check_branch
      %1786 = sbr.rel (0) target = $region81
    $region80: #{tpu_custom_call.1} parent=1 // pred_region
      %s1788 = ssub.s32 256, 256
      %1789 = vsyncadd [#allocation17], %s1788
      %s1790 = sshll.u32 [#allocation18], 4
      %s1791 = int_to_ptr.vmem [resolvable:$true] %s1790
      %1796 = dma.vmem_to_hbm [thread:$0]  %s1791, 256, %s13, [#allocation17], 128, 128, 8
    $region81: #{tpu_custom_call.1} parent=1 // pred_fallthru
      _
    // Predicated region
    $region82: #{tpu_custom_call.1} parent=1 // pred_check
      _
    $region83: #{tpu_custom_call.1} parent=1 // pred_check_branch
      %1798 = sbr.rel (0) target = $region85
    $region84: #{tpu_custom_call.1} parent=1 // pred_region
      %1799 = dma.done [#allocation6], 128
    $region85: #{tpu_custom_call.1} parent=1 // pred_fallthru
      _
    // Predicated region
    $region86: #{tpu_custom_call.1} parent=1 // pred_check
      _
    $region87: #{tpu_custom_call.1} parent=1 // pred_check_branch
      %1801 = sbr.rel (0) target = $region89
    $region88: #{tpu_custom_call.1} parent=1 // pred_region
      %1802 = dma.done [#allocation17], 256
    $region89: #{tpu_custom_call.1} parent=1 // pred_fallthru
      _
    // Predicated region
    $region90: #{tpu_custom_call.1} parent=1 // pred_check
      _
    $region91: #{tpu_custom_call.1} parent=1 // pred_check_branch
      %1804 = sbr.rel (0) target = $region93
    $region92: #{tpu_custom_call.1} parent=1 // pred_region
      %1805 = dma.done [#allocation17], 256
    $region93: #{tpu_custom_call.1} parent=1 // pred_fallthru
      _
    %1806 = vsyncpa [#allocation5], 1
    %1807 = vsyncpa [#allocation8], 1
    %1808 = vsyncpa [#allocation11], 1
    %1809 = vsyncpa [#allocation14], 1
    %1810 = vsyncpa [#allocation6], 1
    %1811 = vsyncpa [#allocation17], 1

</llo_original>
